<compile_context>
chip_gen: v5e
topology: v5e:2x2
jax: 0.10.0
libtpu: 0.0.40
codegen_flags: <defaults>
</compile_context>

<pallas_src>
import functools

import jax
import jax.numpy as jnp
from jax.experimental import pallas as pl
from jax.experimental.pallas import tpu as pltpu

_LANE = 128
_MIB = 1024 * 1024


def _round_up(x, m):
    return ((x + m - 1) // m) * m


# --------------------------- VMEM budgeting ----------------------------------

@functools.lru_cache(maxsize=1)
def _vmem_capacity_bytes():
    """Per-TensorCore VMEM capacity (generation-aware); conservative fallback."""
    try:
        cap = int(getattr(pltpu.get_tpu_info(), "vmem_capacity_bytes", 0))
        if cap >= 32 * _MIB:
            return min(cap, 128 * _MIB)
    except Exception:
        pass
    return 64 * _MIB  # v7x per-core size; safe lower bound for v5e/v6e as well


def _vmem_budget():
    """Budget used by the tile choosers (capacity minus headroom for compiler scratch)."""
    return max(_vmem_capacity_bytes() - 24 * _MIB, 16 * _MIB)


def _vmem_limit(footprint):
    """Scoped VMEM limit requested from Mosaic for a given modeled footprint."""
    cap = _vmem_capacity_bytes()
    return int(min(cap - 16 * _MIB, max(32 * _MIB, footprint + 8 * _MIB)))


def _tiled_vmem_bytes(n_p, f_in_p, tn, tfo):
    """VMEM footprint of one row-tiled gcn layer pallas_call."""
    bf16, f32 = 2, 4
    x_res = n_p * f_in_p * bf16                 # X, Buffered(1), grid-invariant
    a_blk = 2 * tn * n_p * bf16                 # A_hat row block, double-buffered
    w_blk = 2 * f_in_p * tfo * bf16             # W column tile, double-buffered
    b_blk = 2 * tfo * f32                       # bias tile
    o_blk = 2 * tn * tfo * f32                  # output block (f32 worst case)
    ax_scr = tn * f_in_p * bf16                 # persistent A@X scratch
    tmp = tn * f_in_p * f32 + tn * tfo * f32    # in-kernel f32 intermediates
    return x_res + a_blk + w_blk + b_blk + o_blk + ax_scr + tmp


def _fused_vmem_bytes(n_p, f_in_p, widths_p):
    """Generous VMEM estimate for the single-call 4-layer fused kernel."""
    bf16, f32 = 2, 4
    total = n_p * n_p * bf16 + n_p * f_in_p * bf16
    prev = f_in_p
    for wid in widths_p:
        total += prev * wid * bf16 + wid * f32          # W_i, b_i
        total += n_p * prev * (f32 + bf16)              # A@h temporaries
        total += n_p * wid * (f32 + bf16)               # layer output temporaries
        prev = wid
    total += 2 * n_p * widths_p[-1] * f32               # double-buffered output block
    return total


def _choose_row_tile(n, f_in_p, f_out_p, budget):
    """Largest row tile (multiple of 8) whose modeled footprint fits the budget."""
    n_align = _round_up(max(n, 8), 8)
    cands = [t for t in (512, 256, 128, 64, 32, 16, 8) if t <= n_align] or [n_align]
    tfo = min(512, f_out_p)
    for tn in cands:
        n_p = _round_up(n, tn)
        if _tiled_vmem_bytes(n_p, f_in_p, tn, tfo) <= budget:
            return tn, n_p
    # TODO(synk): stream X (and W) as well for graphs where even the smallest row tile
    # with a resident [N, F_in] X exceeds VMEM.
    tn = cands[-1]
    return tn, _round_up(n, tn)


def _choose_feat_tile(n_p, f_in_p, f_out_p, tn, budget):
    """Largest lane-dense output-feature tile that fits alongside the chosen row tile."""
    for tfo in (512, 256, 128):
        if (tfo <= f_out_p and f_out_p % tfo == 0
                and _tiled_vmem_bytes(n_p, f_in_p, tn, tfo) <= budget):
            return tfo
    return 128


# ----------------------------- Pallas kernels ---------------------------------

def _gcn_layer_row_kernel(a_ref, x_ref, w_ref, b_ref, o_ref, ax_ref, *, relu):
    """One (row tile, feature tile) grid step of a GCNConv layer.

    a_ref : (tn, N)     bf16  row block of A_hat (streamed)
    x_ref : (N, F_in)   bf16  full activations (VMEM resident, Buffered(1))
    w_ref : (F_in, tfo) bf16  weight column tile
    b_ref : (1, tfo)    f32   bias tile
    o_ref : (tn, tfo)   bf16 (hidden layers) / f32 (final layer)
    ax_ref: (tn, F_in)  bf16  persistent scratch holding A_rows @ X
    """
    # A_rows @ X depends only on the row tile -> compute once per row tile
    # (the feature axis is the inner "arbitrary" grid axis, so it starts at 0
    # for every row tile even under megacore sharding of the row axis).
    @pl.when(pl.program_id(1) == 0)
    def _():
        ax = jnp.dot(a_ref[...], x_ref[...], preferred_element_type=jnp.float32)
        ax_ref[...] = ax.astype(jnp.bfloat16)

    out = jnp.dot(ax_ref[...], w_ref[...], preferred_element_type=jnp.float32)
    out = out + b_ref[...]
    if relu:
        out = jnp.maximum(out, 0.0)
    o_ref[...] = out.astype(o_ref.dtype)


def _gcn_layer_tiled(a_p, x_p, w_p, b_p, *, tn, relu):
    """Row-streamed GCNConv layer (optionally fused with the following ReLU)."""
    n_p = a_p.shape[0]
    f_in_p, f_out_p = w_p.shape
    budget = _vmem_budget()
    tfo = _choose_feat_tile(n_p, f_in_p, f_out_p, tn, budget)
    grid = (n_p // tn, f_out_p // tfo)
    out_dtype = jnp.bfloat16 if relu else jnp.float32
    footprint = _tiled_vmem_bytes(n_p, f_in_p, tn, tfo)

    kernel = functools.partial(_gcn_layer_row_kernel, relu=relu)
    return pl.pallas_call(
        kernel,
        out_shape=jax.ShapeDtypeStruct((n_p, f_out_p), out_dtype),
        grid=grid,
        in_specs=[
            pl.BlockSpec((tn, n_p), lambda i, j: (i, 0)),            # A_hat row block
            pl.BlockSpec((n_p, f_in_p), lambda i, j: (0, 0),
                         pipeline_mode=pl.Buffered(1)),              # X (resident)
            pl.BlockSpec((f_in_p, tfo), lambda i, j: (0, j)),        # W column tile
            pl.BlockSpec((1, tfo), lambda i, j: (0, j)),             # bias tile
        ],
        out_specs=pl.BlockSpec((tn, tfo), lambda i, j: (i, j)),
        scratch_shapes=[pltpu.VMEM((tn, f_in_p), jnp.bfloat16)],
        compiler_params=pltpu.CompilerParams(
            dimension_semantics=("parallel", "arbitrary"),
            vmem_limit_bytes=_vmem_limit(footprint),
        ),
    )(a_p, x_p, w_p, b_p)


def _make_fused_kernel(n_layers):
    """Single-call kernel running all layers with everything resident in VMEM."""
    def kernel(*refs):
        a_ref, x_ref, o_ref = refs[0], refs[1], refs[-1]
        a = a_ref[...]
        h = x_ref[...]
        for li in range(n_layers):
            w_ref = refs[2 + 2 * li]
            b_ref = refs[3 + 2 * li]
            ax = jnp.dot(a, h, preferred_element_type=jnp.float32).astype(jnp.bfloat16)
            out = jnp.dot(ax, w_ref[...], preferred_element_type=jnp.float32) + b_ref[...]
            if li < n_layers - 1:
                h = jnp.maximum(out, 0.0).astype(jnp.bfloat16)
            else:
                o_ref[...] = out
    return kernel


def _full_block(shape):
    # Grid is (1,): single-buffer everything (no overlap to gain from Buffered(2)).
    return pl.BlockSpec(shape, lambda i: (0,) * len(shape),
                        pipeline_mode=pl.Buffered(1))


def _gcn_forward_fused(prepped, a_bf16, x, n_p, f_in_p0):
    n, f_in = x.shape
    a_p = jnp.pad(a_bf16, ((0, n_p - n), (0, n_p - n)))
    x_p = jnp.pad(x.astype(jnp.bfloat16), ((0, n_p - n), (0, f_in_p0 - f_in)))

    operands = [a_p, x_p]
    for w_p, b_p in prepped:
        operands += [w_p, b_p]
    f_last_p = prepped[-1][0].shape[1]
    widths_p = [w.shape[1] for w, _ in prepped]
    footprint = _fused_vmem_bytes(n_p, f_in_p0, widths_p)

    return pl.pallas_call(
        _make_fused_kernel(len(prepped)),
        out_shape=jax.ShapeDtypeStruct((n_p, f_last_p), jnp.float32),
        grid=(1,),
        in_specs=[_full_block(op.shape) for op in operands],
        out_specs=pl.BlockSpec((n_p, f_last_p), lambda i: (0, 0)),
        compiler_params=pltpu.CompilerParams(
            dimension_semantics=("arbitrary",),
            vmem_limit_bytes=_vmem_limit(footprint),
        ),
    )(*operands)


def _gcn_forward_tiled(prepped, a_bf16, x, f_in_p0):
    n, f_in = x.shape
    budget = _vmem_budget()
    f_in_max = max(w.shape[0] for w, _ in prepped)
    f_out_max = max(w.shape[1] for w, _ in prepped)
    tn, n_p = _choose_row_tile(n, f_in_max, f_out_max, budget)

    # Pad A_hat / X once; activations stay padded between layers (padded A rows/cols
    # are zero so padded rows never pollute valid rows).
    a_p = jnp.pad(a_bf16, ((0, n_p - n), (0, n_p - n)))
    h = jnp.pad(x.astype(jnp.bfloat16), ((0, n_p - n), (0, f_in_p0 - f_in)))

    n_layers = len(prepped)
    for li, (w_p, b_p) in enumerate(prepped):
        h = _gcn_layer_tiled(a_p, h, w_p, b_p, tn=tn, relu=(li < n_layers - 1))
    return h


def gcn_flow_forward(prepped, a_hat, x, *, out_features, force_tiled=False):
    """GCN(in,512)+ReLU -> GCN(512,512)+ReLU -> GCN(512,512)+ReLU -> GCN(512,out)."""
    n, _ = x.shape
    f_in_p0 = prepped[0][0].shape[0]
    widths_p = [w.shape[1] for w, _ in prepped]

    # NOTE: A_hat is fed to the MXU in bf16 (f32 accumulation). For very high-degree
    # graphs keep A_hat in f32 and cast per row tile if extra accuracy is needed.
    a_bf16 = a_hat.astype(jnp.bfloat16)

    n_p8 = _round_up(max(n, 8), 8)
    fused_fits = _fused_vmem_bytes(n_p8, f_in_p0, widths_p) <= _vmem_budget() // 2

    if fused_fits and not force_tiled:
        out = _gcn_forward_fused(prepped, a_bf16, x, n_p8, f_in_p0)
    else:
        out = _gcn_forward_tiled(prepped, a_bf16, x, f_in_p0)
    return out[:n, :out_features]


# ------------------------------ model glue -----------------------------------

def build_normalized_adjacency(edge_index, num_nodes):
    """Dense D^{-1/2}(A + I)D^{-1/2} from a [2, E] edge_index (PyG gcn_norm).

    Matches add_remaining_self_loops: a self-loop is only added to nodes that do not
    already have one (duplicate edges accumulate, as scatter_add does).
    """
    src, dst = edge_index[0], edge_index[1]
    a = jnp.zeros((num_nodes, num_nodes), jnp.float32)
    a = a.at[dst, src].add(1.0)                          # message flows source -> target
    diag = jnp.diagonal(a)
    a = a + jnp.diag(jnp.where(diag == 0, 1.0, 0.0))     # remaining self-loops only
    deg = a.sum(axis=1)
    dinv = jnp.where(deg > 0, 1.0 / jnp.sqrt(deg), 0.0)
    return dinv[:, None] * a * dinv[None, :]


def glorot(key, f_in, f_out):
    lim = jnp.sqrt(6.0 / (f_in + f_out))
    return jax.random.uniform(key, (f_in, f_out), jnp.float32, -lim, lim)


def init_gcn_flow_params(key, in_features, out_features, hidden=512):
    dims = [(in_features, hidden), (hidden, hidden), (hidden, hidden),
            (hidden, out_features)]
    params = []
    for i, (fi, fo) in enumerate(dims):
        k = jax.random.fold_in(key, i)
        params.append((glorot(k, fi, fo), jnp.zeros((fo,), jnp.float32)))
    return params


def prepare_gcn_flow_params(params):
    """Pad + cast weights/biases once (bf16 W, f32 b, lane-dense 128-padded dims)."""
    prepped = []
    for w, b in params:
        f_in, f_out = w.shape
        f_in_p = _round_up(max(f_in, _LANE), _LANE)
        f_out_p = _round_up(max(f_out, _LANE), _LANE)
        w_p = jnp.pad(w.astype(jnp.bfloat16),
                      ((0, f_in_p - f_in), (0, f_out_p - f_out)))
        b_p = jnp.pad(b.astype(jnp.float32), (0, f_out_p - f_out)).reshape(1, f_out_p)
        prepped.append((w_p, b_p))
    return prepped


def gcn_flow_reference_bf16(params, a_hat, x):
    """Pure-JAX reference matching the kernels' bf16-input / f32-accumulate numerics
    and (A_hat @ H) @ W evaluation order (bf16 intermediate activations)."""
    a = a_hat.astype(jnp.bfloat16)
    h = x.astype(jnp.bfloat16)
    n_layers = len(params)
    out = None
    for i, (w, b) in enumerate(params):
        ax = jnp.dot(a, h, preferred_element_type=jnp.float32).astype(jnp.bfloat16)
        out = jnp.dot(ax, w.astype(jnp.bfloat16),
                      preferred_element_type=jnp.float32) + b[None, :]
        if i < n_layers - 1:
            h = jnp.maximum(out, 0.0).astype(jnp.bfloat16)
    return out


def gcn_flow_reference_f32(params, a_hat, x):
    """Full-precision reference in the original GCNConv A_hat @ (X @ W) order."""
    h = x
    n_layers = len(params)
    for i, (w, b) in enumerate(params):
        h = a_hat @ (h @ w) + b[None, :]
        if i < n_layers - 1:
            h = jnp.maximum(h, 0.0)
    return h


# --------------------------------- main ---------------------------------------

if __name__ == "__main__":
    key = jax.random.PRNGKey(0)
    k_x1, k_x2, k_p = jax.random.split(key, 3)

    in_features, out_features, hidden = 8, 4, 512

    def ring_graph(num_nodes):
        nodes = jnp.arange(num_nodes)
        nxt = (nodes + 1) % num_nodes
        return jnp.stack([jnp.concatenate([nodes, nxt]),
                          jnp.concatenate([nxt, nodes])], axis=0).astype(jnp.int32)

    params = init_gcn_flow_params(k_p, in_features, out_features, hidden)
    prepped = prepare_gcn_flow_params(params)

    # ---- small graph: single fused kernel (all 4 layers in one pallas_call) ----
    n1 = 16
    x1 = jax.random.normal(k_x1, (n1, in_features), jnp.float32)
    a1 = build_normalized_adjacency(ring_graph(n1), n1)

    fwd = jax.jit(functools.partial(gcn_flow_forward, out_features=out_features))
    out1 = jax.block_until_ready(fwd(prepped, a1, x1))
    assert out1.shape == (n1, out_features)

    ref1 = gcn_flow_reference_bf16(params, a1, x1)
    assert jnp.allclose(out1, ref1, atol=2e-3, rtol=2e-3), \
        float(jnp.max(jnp.abs(out1 - ref1)))
    ref1_f32 = gcn_flow_reference_f32(params, a1, x1)
    assert jnp.allclose(out1, ref1_f32, atol=5e-2, rtol=5e-2), \
        float(jnp.max(jnp.abs(out1 - ref1_f32)))

    # ---- larger graph: row-streamed tiled path (exercises the pipelined grid) ----
    n2 = 192
    x2 = jax.random.normal(k_x2, (n2, in_features), jnp.float32)
    a2 = build_normalized_adjacency(ring_graph(n2), n2)

    fwd_tiled = jax.jit(functools.partial(gcn_flow_forward,
                                          out_features=out_features,
                                          force_tiled=True))
    out2 = jax.block_until_ready(fwd_tiled(prepped, a2, x2))
    assert out2.shape == (n2, out_features)

    ref2 = gcn_flow_reference_bf16(params, a2, x2)
    assert jnp.allclose(out2, ref2, atol=2e-3, rtol=2e-3), \
        float(jnp.max(jnp.abs(out2 - ref2)))
    ref2_f32 = gcn_flow_reference_f32(params, a2, x2)
    assert jnp.allclose(out2, ref2_f32, atol=5e-2, rtol=5e-2), \
        float(jnp.max(jnp.abs(out2 - ref2_f32)))

    print("KERNEL_OK")
</pallas_src>

<mosaic_0001>
module attributes {stable_mosaic.version = 11 : i64} {
  func.func @kernel(%arg0: i32, %arg1: memref<16x16xbf16, #tpu.memory_space<vmem>>, %arg2: memref<16x128xbf16, #tpu.memory_space<vmem>>, %arg3: memref<128x512xbf16, #tpu.memory_space<vmem>>, %arg4: memref<1x512xf32, #tpu.memory_space<vmem>>, %arg5: memref<512x512xbf16, #tpu.memory_space<vmem>>, %arg6: memref<1x512xf32, #tpu.memory_space<vmem>>, %arg7: memref<512x512xbf16, #tpu.memory_space<vmem>>, %arg8: memref<1x512xf32, #tpu.memory_space<vmem>>, %arg9: memref<512x128xbf16, #tpu.memory_space<vmem>>, %arg10: memref<1x128xf32, #tpu.memory_space<vmem>>, %arg11: memref<16x128xf32, #tpu.memory_space<vmem>>) attributes {dimension_semantics = [#tpu.dimension_semantics<arbitrary>], iteration_bounds = array<i64: 1>, scalar_prefetch = 0 : i64, scratch_operands = 0 : i64, tpu.core_type = #tpu.core_type<tc>, window_params = [{pipeline_mode = #tpu.pipeline_mode<synchronous>, transform_indices = @transform_0, window_bounds = array<i64: 16, 16>}, {pipeline_mode = #tpu.pipeline_mode<synchronous>, transform_indices = @transform_1, window_bounds = array<i64: 16, 128>}, {pipeline_mode = #tpu.pipeline_mode<synchronous>, transform_indices = @transform_2, window_bounds = array<i64: 128, 512>}, {pipeline_mode = #tpu.pipeline_mode<synchronous>, transform_indices = @transform_3, window_bounds = array<i64: 1, 512>}, {pipeline_mode = #tpu.pipeline_mode<synchronous>, transform_indices = @transform_4, window_bounds = array<i64: 512, 512>}, {pipeline_mode = #tpu.pipeline_mode<synchronous>, transform_indices = @transform_5, window_bounds = array<i64: 1, 512>}, {pipeline_mode = #tpu.pipeline_mode<synchronous>, transform_indices = @transform_6, window_bounds = array<i64: 512, 512>}, {pipeline_mode = #tpu.pipeline_mode<synchronous>, transform_indices = @transform_7, window_bounds = array<i64: 1, 512>}, {pipeline_mode = #tpu.pipeline_mode<synchronous>, transform_indices = @transform_8, window_bounds = array<i64: 512, 128>}, {pipeline_mode = #tpu.pipeline_mode<synchronous>, transform_indices = @transform_9, window_bounds = array<i64: 1, 128>}, {pipeline_mode = #tpu.pipeline_mode<synchronous>, transform_indices = @transform_10, window_bounds = array<i64: 16, 128>}]} {
    %c0 = arith.constant 0 : index
    %c0_0 = arith.constant 0 : index
    %0 = vector.load %arg1[%c0, %c0_0] : memref<16x16xbf16, #tpu.memory_space<vmem>>, vector<16x16xbf16>
    %c0_1 = arith.constant 0 : index
    %c0_2 = arith.constant 0 : index
    %1 = vector.load %arg2[%c0_1, %c0_2] : memref<16x128xbf16, #tpu.memory_space<vmem>>, vector<16x128xbf16>
    %cst = arith.constant dense<0.000000e+00> : vector<16x128xf32>
    %2 = tpu.matmul %0, %1, %cst {dimension_numbers = #tpu.dot_dimension_numbers<[1], [0], [0], [1], [0, 0, 1, 1], [], []>} : vector<16x16xbf16>, vector<16x128xbf16>, vector<16x128xf32> -> vector<16x128xf32>
    %3 = arith.truncf %2 : vector<16x128xf32> to vector<16x128xbf16>
    %c0_3 = arith.constant 0 : index
    %c0_4 = arith.constant 0 : index
    %4 = vector.load %arg3[%c0_3, %c0_4] : memref<128x512xbf16, #tpu.memory_space<vmem>>, vector<128x512xbf16>
    %cst_5 = arith.constant dense<0.000000e+00> : vector<16x512xf32>
    %5 = tpu.matmul %3, %4, %cst_5 {dimension_numbers = #tpu.dot_dimension_numbers<[1], [0], [0], [1], [0, 0, 1, 1], [], []>} : vector<16x128xbf16>, vector<128x512xbf16>, vector<16x512xf32> -> vector<16x512xf32>
    %c0_6 = arith.constant 0 : index
    %c0_7 = arith.constant 0 : index
    %6 = vector.load %arg4[%c0_6, %c0_7] : memref<1x512xf32, #tpu.memory_space<vmem>>, vector<1x512xf32>
    %7 = vector.broadcast %6 : vector<1x512xf32> to vector<16x512xf32>
    %8 = arith.addf %5, %7 : vector<16x512xf32>
    %cst_8 = arith.constant 0.000000e+00 : f32
    %9 = vector.broadcast %cst_8 : f32 to vector<16x512xf32>
    %10 = arith.maximumf %8, %9 : vector<16x512xf32>
    %11 = arith.truncf %10 : vector<16x512xf32> to vector<16x512xbf16>
    %cst_9 = arith.constant dense<0.000000e+00> : vector<16x512xf32>
    %12 = tpu.matmul %0, %11, %cst_9 {dimension_numbers = #tpu.dot_dimension_numbers<[1], [0], [0], [1], [0, 0, 1, 1], [], []>} : vector<16x16xbf16>, vector<16x512xbf16>, vector<16x512xf32> -> vector<16x512xf32>
    %13 = arith.truncf %12 : vector<16x512xf32> to vector<16x512xbf16>
    %c0_10 = arith.constant 0 : index
    %c0_11 = arith.constant 0 : index
    %14 = vector.load %arg5[%c0_10, %c0_11] : memref<512x512xbf16, #tpu.memory_space<vmem>>, vector<512x512xbf16>
    %cst_12 = arith.constant dense<0.000000e+00> : vector<16x512xf32>
    %15 = tpu.matmul %13, %14, %cst_12 {dimension_numbers = #tpu.dot_dimension_numbers<[1], [0], [0], [1], [0, 0, 1, 1], [], []>} : vector<16x512xbf16>, vector<512x512xbf16>, vector<16x512xf32> -> vector<16x512xf32>
    %c0_13 = arith.constant 0 : index
    %c0_14 = arith.constant 0 : index
    %16 = vector.load %arg6[%c0_13, %c0_14] : memref<1x512xf32, #tpu.memory_space<vmem>>, vector<1x512xf32>
    %17 = vector.broadcast %16 : vector<1x512xf32> to vector<16x512xf32>
    %18 = arith.addf %15, %17 : vector<16x512xf32>
    %cst_15 = arith.constant 0.000000e+00 : f32
    %19 = vector.broadcast %cst_15 : f32 to vector<16x512xf32>
    %20 = arith.maximumf %18, %19 : vector<16x512xf32>
    %21 = arith.truncf %20 : vector<16x512xf32> to vector<16x512xbf16>
    %cst_16 = arith.constant dense<0.000000e+00> : vector<16x512xf32>
    %22 = tpu.matmul %0, %21, %cst_16 {dimension_numbers = #tpu.dot_dimension_numbers<[1], [0], [0], [1], [0, 0, 1, 1], [], []>} : vector<16x16xbf16>, vector<16x512xbf16>, vector<16x512xf32> -> vector<16x512xf32>
    %23 = arith.truncf %22 : vector<16x512xf32> to vector<16x512xbf16>
    %c0_17 = arith.constant 0 : index
    %c0_18 = arith.constant 0 : index
    %24 = vector.load %arg7[%c0_17, %c0_18] : memref<512x512xbf16, #tpu.memory_space<vmem>>, vector<512x512xbf16>
    %cst_19 = arith.constant dense<0.000000e+00> : vector<16x512xf32>
    %25 = tpu.matmul %23, %24, %cst_19 {dimension_numbers = #tpu.dot_dimension_numbers<[1], [0], [0], [1], [0, 0, 1, 1], [], []>} : vector<16x512xbf16>, vector<512x512xbf16>, vector<16x512xf32> -> vector<16x512xf32>
    %c0_20 = arith.constant 0 : index
    %c0_21 = arith.constant 0 : index
    %26 = vector.load %arg8[%c0_20, %c0_21] : memref<1x512xf32, #tpu.memory_space<vmem>>, vector<1x512xf32>
    %27 = vector.broadcast %26 : vector<1x512xf32> to vector<16x512xf32>
    %28 = arith.addf %25, %27 : vector<16x512xf32>
    %cst_22 = arith.constant 0.000000e+00 : f32
    %29 = vector.broadcast %cst_22 : f32 to vector<16x512xf32>
    %30 = arith.maximumf %28, %29 : vector<16x512xf32>
    %31 = arith.truncf %30 : vector<16x512xf32> to vector<16x512xbf16>
    %cst_23 = arith.constant dense<0.000000e+00> : vector<16x512xf32>
    %32 = tpu.matmul %0, %31, %cst_23 {dimension_numbers = #tpu.dot_dimension_numbers<[1], [0], [0], [1], [0, 0, 1, 1], [], []>} : vector<16x16xbf16>, vector<16x512xbf16>, vector<16x512xf32> -> vector<16x512xf32>
    %33 = arith.truncf %32 : vector<16x512xf32> to vector<16x512xbf16>
    %c0_24 = arith.constant 0 : index
    %c0_25 = arith.constant 0 : index
    %34 = vector.load %arg9[%c0_24, %c0_25] : memref<512x128xbf16, #tpu.memory_space<vmem>>, vector<512x128xbf16>
    %cst_26 = arith.constant dense<0.000000e+00> : vector<16x128xf32>
    %35 = tpu.matmul %33, %34, %cst_26 {dimension_numbers = #tpu.dot_dimension_numbers<[1], [0], [0], [1], [0, 0, 1, 1], [], []>} : vector<16x512xbf16>, vector<512x128xbf16>, vector<16x128xf32> -> vector<16x128xf32>
    %c0_27 = arith.constant 0 : index
    %c0_28 = arith.constant 0 : index
    %36 = vector.load %arg10[%c0_27, %c0_28] : memref<1x128xf32, #tpu.memory_space<vmem>>, vector<1x128xf32>
    %37 = vector.broadcast %36 : vector<1x128xf32> to vector<16x128xf32>
    %38 = arith.addf %35, %37 : vector<16x128xf32>
    %c0_29 = arith.constant 0 : index
    %c0_30 = arith.constant 0 : index
    %39 = vector.load %arg11[%c0_29, %c0_30] : memref<16x128xf32, #tpu.memory_space<vmem>>, vector<16x128xf32>
    tpu.vector_store %arg11[%c0_29, %c0_30], %38 {strides = array<i32>} : memref<16x128xf32, #tpu.memory_space<vmem>>, vector<16x128xf32>,
    return
  }
  func.func @transform_0(%arg0: i32) -> (i32, i32) {
    %c0_i32 = arith.constant 0 : i32
    %c0_i32_0 = arith.constant 0 : i32
    %c0_i32_1 = arith.constant 0 : i32
    return %c0_i32, %c0_i32_0 : i32, i32
  }
  func.func @transform_1(%arg0: i32) -> (i32, i32) {
    %c0_i32 = arith.constant 0 : i32
    %c0_i32_0 = arith.constant 0 : i32
    %c0_i32_1 = arith.constant 0 : i32
    return %c0_i32, %c0_i32_0 : i32, i32
  }
  func.func @transform_2(%arg0: i32) -> (i32, i32) {
    %c0_i32 = arith.constant 0 : i32
    %c0_i32_0 = arith.constant 0 : i32
    %c0_i32_1 = arith.constant 0 : i32
    return %c0_i32, %c0_i32_0 : i32, i32
  }
  func.func @transform_3(%arg0: i32) -> (i32, i32) {
    %c0_i32 = arith.constant 0 : i32
    %c0_i32_0 = arith.constant 0 : i32
    %c0_i32_1 = arith.constant 0 : i32
    return %c0_i32, %c0_i32_0 : i32, i32
  }
  func.func @transform_4(%arg0: i32) -> (i32, i32) {
    %c0_i32 = arith.constant 0 : i32
    %c0_i32_0 = arith.constant 0 : i32
    %c0_i32_1 = arith.constant 0 : i32
    return %c0_i32, %c0_i32_0 : i32, i32
  }
  func.func @transform_5(%arg0: i32) -> (i32, i32) {
    %c0_i32 = arith.constant 0 : i32
    %c0_i32_0 = arith.constant 0 : i32
    %c0_i32_1 = arith.constant 0 : i32
    return %c0_i32, %c0_i32_0 : i32, i32
  }
  func.func @transform_6(%arg0: i32) -> (i32, i32) {
    %c0_i32 = arith.constant 0 : i32
    %c0_i32_0 = arith.constant 0 : i32
    %c0_i32_1 = arith.constant 0 : i32
    return %c0_i32, %c0_i32_0 : i32, i32
  }
  func.func @transform_7(%arg0: i32) -> (i32, i32) {
    %c0_i32 = arith.constant 0 : i32
    %c0_i32_0 = arith.constant 0 : i32
    %c0_i32_1 = arith.constant 0 : i32
    return %c0_i32, %c0_i32_0 : i32, i32
  }
  func.func @transform_8(%arg0: i32) -> (i32, i32) {
    %c0_i32 = arith.constant 0 : i32
    %c0_i32_0 = arith.constant 0 : i32
    %c0_i32_1 = arith.constant 0 : i32
    return %c0_i32, %c0_i32_0 : i32, i32
  }
  func.func @transform_9(%arg0: i32) -> (i32, i32) {
    %c0_i32 = arith.constant 0 : i32
    %c0_i32_0 = arith.constant 0 : i32
    %c0_i32_1 = arith.constant 0 : i32
    return %c0_i32, %c0_i32_0 : i32, i32
  }
  func.func @transform_10(%arg0: i32) -> (i32, i32) {
    %c0_i32 = arith.constant 0 : i32
    %c0_i32_0 = arith.constant 0 : i32
    %c0_i32_1 = arith.constant 0 : i32
    return %c0_i32, %c0_i32_0 : i32, i32
  }
}

</mosaic_0001>

<llo_original>
// kernel: gcn_flow_forward.1
$region0: #{gcn_flow_forward.1}
  #allocation0 [shape = 'u32[]', space=smem, size = 0x4, offset = 0x4, fixed_abs, tag = 'smem constant byte address 0x4 - core index']
  #allocation1 [shape = 'u32[72,128]{1,0:T(1,128)}', space=vmem, size = 0x9000, scoped, tag = 'internal scratch']
  %s0 = inlined_call_operand.vmem [shape: bf16[16,16], index: 0, kind: input, shape index: {}]
  %s1 = inlined_call_operand.vmem [shape: bf16[16,128], index: 1, kind: input, shape index: {}]
  %s2 = inlined_call_operand.hbm [shape: bf16[128,512], index: 2, kind: input, shape index: {}]
  %s3 = inlined_call_operand.vmem [shape: f32[1,512], index: 3, kind: input, shape index: {}]
  %s4 = inlined_call_operand.hbm [shape: bf16[512,512], index: 4, kind: input, shape index: {}]
  %s5 = inlined_call_operand.vmem [shape: f32[1,512], index: 5, kind: input, shape index: {}]
  %s6 = inlined_call_operand.hbm [shape: bf16[512,512], index: 6, kind: input, shape index: {}]
  %s7 = inlined_call_operand.vmem [shape: f32[1,512], index: 7, kind: input, shape index: {}]
  %s8 = inlined_call_operand.hbm [shape: bf16[512,128], index: 8, kind: input, shape index: {}]
  %s9 = inlined_call_operand.vmem [shape: f32[1,128], index: 9, kind: input, shape index: {}]
  %s10 = inlined_call_operand.vmem [shape: f32[16,128], index: 10, kind: output, shape index: {}]
  %s11 = sld [smem:[#allocation0]]
  $region66: #{gcn_flow_forward.1} parent=0
    _
  %s13 = ssub.s32 1, %s11
  %s14 = scalar_select 0, %s13, %s11
  $region1: #{gcn_flow_forward.1} parent=0
    #allocation2 [shape = 'u8[131072]{0}', space=vmem, size = 0x20000, scoped, tag = 'input window, operand 2, single buffered']
    #allocation3 [shape = 's32[1]{0}', space=sflag, size = 0x4, scoped, tag = 'scoped memory for gcn_flow_forward.1']
    #allocation4 [shape = 'u8[524288]{0}', space=vmem, size = 0x80000, scoped, tag = 'input window, operand 4, single buffered']
    #allocation5 [shape = 's32[1]{0}', space=sflag, size = 0x4, scoped, tag = 'scoped memory for gcn_flow_forward.1']
    #allocation6 [shape = 'u8[524288]{0}', space=vmem, size = 0x80000, scoped, tag = 'input window, operand 6, single buffered']
    #allocation7 [shape = 'u8[131072]{0}', space=vmem, size = 0x20000, scoped, tag = 'input window, operand 8, single buffered']
    #allocation8 [shape = 's32[1]{0}', space=sflag, size = 0x4, scoped, tag = 'scoped memory for gcn_flow_forward.1']
    %15 = vsyncpa [#allocation3], 0
    %16 = vsyncpa [#allocation5], 0
    %17 = vsyncpa [#allocation8], 0
    // Predicated region
    $region2: #{gcn_flow_forward.1} parent=1 // pred_check
      _
    $region3: #{gcn_flow_forward.1} parent=1 // pred_check_branch
      %19 = sbr.rel (0) target = $region5
    $region4: #{gcn_flow_forward.1} parent=1 // pred_region
      _
    $region5: #{gcn_flow_forward.1} parent=1 // pred_fallthru
      _
    // Predicated region
    $region6: #{gcn_flow_forward.1} parent=1 // pred_check
      _
    $region7: #{gcn_flow_forward.1} parent=1 // pred_check_branch
      %21 = sbr.rel (0) target = $region9
    $region8: #{gcn_flow_forward.1} parent=1 // pred_region
      _
    $region9: #{gcn_flow_forward.1} parent=1 // pred_fallthru
      _
    // Predicated region
    $region10: #{gcn_flow_forward.1} parent=1 // pred_check
      _
    $region11: #{gcn_flow_forward.1} parent=1 // pred_check_branch
      %23 = sbr.rel (0) target = $region13
    $region12: #{gcn_flow_forward.1} parent=1 // pred_region
      %25 = vsyncadd [#allocation3], 0
      %s26 = sshll.u32 %s2, 4
      %s27 = int_to_ptr.hbm [resolvable:$true] %s26
      %s28 = sshll.u32 [#allocation2], 4
      %s29 = int_to_ptr.vmem [resolvable:$true] %s28
      %34 = dma.hbm_to_vmem [thread:$0]  %s27, 4096, %s29, [#allocation3], 256, 256, 16
    $region13: #{gcn_flow_forward.1} parent=1 // pred_fallthru
      _
    // Predicated region
    $region14: #{gcn_flow_forward.1} parent=1 // pred_check
      _
    $region15: #{gcn_flow_forward.1} parent=1 // pred_check_branch
      %36 = sbr.rel (0) target = $region17
    $region16: #{gcn_flow_forward.1} parent=1 // pred_region
      _
    $region17: #{gcn_flow_forward.1} parent=1 // pred_fallthru
      _
    // Predicated region
    $region18: #{gcn_flow_forward.1} parent=1 // pred_check
      _
    $region19: #{gcn_flow_forward.1} parent=1 // pred_check_branch
      %38 = sbr.rel (0) target = $region21
    $region20: #{gcn_flow_forward.1} parent=1 // pred_region
      %40 = vsyncadd [#allocation5], 0
      %s41 = sshll.u32 %s4, 4
      %s42 = int_to_ptr.hbm [resolvable:$true] %s41
      %s43 = sshll.u32 [#allocation4], 4
      %s44 = int_to_ptr.vmem [resolvable:$true] %s43
      %49 = dma.hbm_to_vmem [thread:$0]  %s42, 16384, %s44, [#allocation5], 256, 256, 16
    $region21: #{gcn_flow_forward.1} parent=1 // pred_fallthru
      _
    // Predicated region
    $region22: #{gcn_flow_forward.1} parent=1 // pred_check
      _
    $region23: #{gcn_flow_forward.1} parent=1 // pred_check_branch
      %51 = sbr.rel (0) target = $region25
    $region24: #{gcn_flow_forward.1} parent=1 // pred_region
      _
    $region25: #{gcn_flow_forward.1} parent=1 // pred_fallthru
      _
    // Predicated region
    $region26: #{gcn_flow_forward.1} parent=1 // pred_check
      _
    $region27: #{gcn_flow_forward.1} parent=1 // pred_check_branch
      %53 = sbr.rel (0) target = $region29
    $region28: #{gcn_flow_forward.1} parent=1 // pred_region
      %55 = vsyncadd [#allocation5], 0
      %s56 = sshll.u32 %s6, 4
      %s57 = int_to_ptr.hbm [resolvable:$true] %s56
      %s58 = sshll.u32 [#allocation6], 4
      %s59 = int_to_ptr.vmem [resolvable:$true] %s58
      %64 = dma.hbm_to_vmem [thread:$0]  %s57, 16384, %s59, [#allocation5], 256, 256, 16
    $region29: #{gcn_flow_forward.1} parent=1 // pred_fallthru
      _
    // Predicated region
    $region30: #{gcn_flow_forward.1} parent=1 // pred_check
      _
    $region31: #{gcn_flow_forward.1} parent=1 // pred_check_branch
      %66 = sbr.rel (0) target = $region33
    $region32: #{gcn_flow_forward.1} parent=1 // pred_region
      _
    $region33: #{gcn_flow_forward.1} parent=1 // pred_fallthru
      _
    // Predicated region
    $region34: #{gcn_flow_forward.1} parent=1 // pred_check
      _
    $region35: #{gcn_flow_forward.1} parent=1 // pred_check_branch
      %68 = sbr.rel (0) target = $region37
    $region36: #{gcn_flow_forward.1} parent=1 // pred_region
      %70 = vsyncadd [#allocation8], 0
      %s71 = sshll.u32 %s8, 4
      %s72 = int_to_ptr.hbm [resolvable:$true] %s71
      %s73 = sshll.u32 [#allocation7], 4
      %s74 = int_to_ptr.vmem [resolvable:$true] %s73
      %79 = dma.hbm_to_vmem [thread:$0]  %s72, 4096, %s74, [#allocation8], 64, 64, 4
    $region37: #{gcn_flow_forward.1} parent=1 // pred_fallthru
      _
    // Predicated region
    $region38: #{gcn_flow_forward.1} parent=1 // pred_check
      _
    $region39: #{gcn_flow_forward.1} parent=1 // pred_check_branch
      %81 = sbr.rel (0) target = $region41
    $region40: #{gcn_flow_forward.1} parent=1 // pred_region
      _
    $region41: #{gcn_flow_forward.1} parent=1 // pred_fallthru
      _
    // Predicated region
    $region42: #{gcn_flow_forward.1} parent=1 // pred_check
      _
    $region43: #{gcn_flow_forward.1} parent=1 // pred_check_branch
      %83 = sbr.rel (0) target = $region45
    $region44: #{gcn_flow_forward.1} parent=1 // pred_region
      %85 = dma.done [#allocation3], 4096
    $region45: #{gcn_flow_forward.1} parent=1 // pred_fallthru
      _
    // Predicated region
    $region46: #{gcn_flow_forward.1} parent=1 // pred_check
      _
    $region47: #{gcn_flow_forward.1} parent=1 // pred_check_branch
      %87 = sbr.rel (0) target = $region49
    $region48: #{gcn_flow_forward.1} parent=1 // pred_region
      %89 = dma.done [#allocation5], 16384
    $region49: #{gcn_flow_forward.1} parent=1 // pred_fallthru
      _
    // Predicated region
    $region50: #{gcn_flow_forward.1} parent=1 // pred_check
      _
    $region51: #{gcn_flow_forward.1} parent=1 // pred_check_branch
      %91 = sbr.rel (0) target = $region53
    $region52: #{gcn_flow_forward.1} parent=1 // pred_region
      %93 = dma.done [#allocation5], 16384
    $region53: #{gcn_flow_forward.1} parent=1 // pred_fallthru
      _
    // Predicated region
    $region54: #{gcn_flow_forward.1} parent=1 // pred_check
      _
    $region55: #{gcn_flow_forward.1} parent=1 // pred_check_branch
      %95 = sbr.rel (0) target = $region57
    $region56: #{gcn_flow_forward.1} parent=1 // pred_region
      %97 = dma.done [#allocation8], 4096
    $region57: #{gcn_flow_forward.1} parent=1 // pred_fallthru
      _
    %v99 = vld [vmem:[%s0] sm:$0xf]
    %v100 = vld [vmem:[%s0 + $0x4] sm:$0xf]
    %v101 = vld [vmem:[%s1] sm:$0xf]
    %v102 = vld [vmem:[%s1 + $0x4] sm:$0xf]
    %v105 = vunpack.c.l.b16 %v99
    %v106 = vunpack.c.l.b16 %v100
    %v107 = vpack.c.b16 %v106, %v105
    %v110 = vunpack.c.l.b16 %v101
    %v111 = vunpack.c.l.b16 %v102
    %v112 = vpack.c.b16 %v111, %v110
    %vm114 = vcmask 130048
    %v116 = vsel %vm114, %v107, 0
    %118 = vmatpush.bf16.msra.mxu0 0
    %119 = vmatpush.bf16.msra.mxu0 0
    %120 = vmatpush.bf16.msra.mxu0 0
    %121 = vmatpush.bf16.msra.mxu0 0
    %122 = vmatpush.bf16.msra.mxu0 0
    %123 = vmatpush.bf16.msra.mxu0 0
    %124 = vmatpush.bf16.msra.mxu0 0
    %125 = vmatpush.bf16.msra.mxu0 %v112
    %126 = vmatmul.bf16.gmra.mxu0 %v116
    %v127 = vpop.f32.mrf.mxu0
    %v128 = vadd.f32 0.0, %v127
    %v129 = vpop.f32.mrf.mxu0
    %v130 = vadd.f32 0.0, %v129
    %131 = vdwg.mxu0
    %v132 = vpack.c.bf16 %v130, %v128
    %v133 = vld [vmem:[#allocation2] sm:$0xff]
    %v134 = vld [vmem:[#allocation2 + $0x8] sm:$0xff]
    %v135 = vld [vmem:[#allocation2 + $0x10] sm:$0xff]
    %v136 = vld [vmem:[#allocation2 + $0x18] sm:$0xff]
    %v137 = vld [vmem:[#allocation2 + $0x20] sm:$0xff]
    %v138 = vld [vmem:[#allocation2 + $0x28] sm:$0xff]
    %v139 = vld [vmem:[#allocation2 + $0x30] sm:$0xff]
    %v140 = vld [vmem:[#allocation2 + $0x38] sm:$0xff]
    %v141 = vld [vmem:[#allocation2 + $0x40] sm:$0xff]
    %v142 = vld [vmem:[#allocation2 + $0x48] sm:$0xff]
    %v143 = vld [vmem:[#allocation2 + $0x50] sm:$0xff]
    %v144 = vld [vmem:[#allocation2 + $0x58] sm:$0xff]
    %v145 = vld [vmem:[#allocation2 + $0x60] sm:$0xff]
    %v146 = vld [vmem:[#allocation2 + $0x68] sm:$0xff]
    %v147 = vld [vmem:[#allocation2 + $0x70] sm:$0xff]
    %v148 = vld [vmem:[#allocation2 + $0x78] sm:$0xff]
    %v149 = vld [vmem:[#allocation2 + $0x80] sm:$0xff]
    %v150 = vld [vmem:[#allocation2 + $0x88] sm:$0xff]
    %v151 = vld [vmem:[#allocation2 + $0x90] sm:$0xff]
    %v152 = vld [vmem:[#allocation2 + $0x98] sm:$0xff]
    %v153 = vld [vmem:[#allocation2 + $0xa0] sm:$0xff]
    %v154 = vld [vmem:[#allocation2 + $0xa8] sm:$0xff]
    %v155 = vld [vmem:[#allocation2 + $0xb0] sm:$0xff]
    %v156 = vld [vmem:[#allocation2 + $0xb8] sm:$0xff]
    %v157 = vld [vmem:[#allocation2 + $0xc0] sm:$0xff]
    %v158 = vld [vmem:[#allocation2 + $0xc8] sm:$0xff]
    %v159 = vld [vmem:[#allocation2 + $0xd0] sm:$0xff]
    %v160 = vld [vmem:[#allocation2 + $0xd8] sm:$0xff]
    %v161 = vld [vmem:[#allocation2 + $0xe0] sm:$0xff]
    %v162 = vld [vmem:[#allocation2 + $0xe8] sm:$0xff]
    %v163 = vld [vmem:[#allocation2 + $0xf0] sm:$0xff]
    %v164 = vld [vmem:[#allocation2 + $0xf8] sm:$0xff]
    %v165 = vld [vmem:[%s3] sm:$0xf]
    %v167 = vperm.slane %v165, 0
    %v168 = vperm.slane %v165, 1
    %v169 = vperm.slane %v165, 2
    %v170 = vperm.slane %v165, 3
    %v207 = vunpack.c.l.b16 %v133
    %v208 = vunpack.c.h.b16 %v133
    %v209 = vunpack.c.l.b16 %v134
    %v210 = vunpack.c.h.b16 %v134
    %v211 = vunpack.c.l.b16 %v135
    %v212 = vunpack.c.h.b16 %v135
    %v213 = vunpack.c.l.b16 %v136
    %v214 = vunpack.c.h.b16 %v136
    %v215 = vunpack.c.l.b16 %v137
    %v216 = vunpack.c.h.b16 %v137
    %v217 = vunpack.c.l.b16 %v138
    %v218 = vunpack.c.h.b16 %v138
    %v219 = vunpack.c.l.b16 %v139
    %v220 = vunpack.c.h.b16 %v139
    %v221 = vunpack.c.l.b16 %v140
    %v222 = vunpack.c.h.b16 %v140
    %v223 = vunpack.c.l.b16 %v141
    %v224 = vunpack.c.h.b16 %v141
    %v225 = vunpack.c.l.b16 %v142
    %v226 = vunpack.c.h.b16 %v142
    %v227 = vunpack.c.l.b16 %v143
    %v228 = vunpack.c.h.b16 %v143
    %v229 = vunpack.c.l.b16 %v144
    %v230 = vunpack.c.h.b16 %v144
    %v231 = vunpack.c.l.b16 %v145
    %v232 = vunpack.c.h.b16 %v145
    %v233 = vunpack.c.l.b16 %v146
    %v234 = vunpack.c.h.b16 %v146
    %v235 = vunpack.c.l.b16 %v147
    %v236 = vunpack.c.h.b16 %v147
    %v237 = vunpack.c.l.b16 %v148
    %v238 = vunpack.c.h.b16 %v148
    %v239 = vunpack.c.l.b16 %v149
    %v240 = vunpack.c.h.b16 %v149
    %v241 = vunpack.c.l.b16 %v150
    %v242 = vunpack.c.h.b16 %v150
    %v243 = vunpack.c.l.b16 %v151
    %v244 = vunpack.c.h.b16 %v151
    %v245 = vunpack.c.l.b16 %v152
    %v246 = vunpack.c.h.b16 %v152
    %v247 = vunpack.c.l.b16 %v153
    %v248 = vunpack.c.h.b16 %v153
    %v249 = vunpack.c.l.b16 %v154
    %v250 = vunpack.c.h.b16 %v154
    %v251 = vunpack.c.l.b16 %v155
    %v252 = vunpack.c.h.b16 %v155
    %v253 = vunpack.c.l.b16 %v156
    %v254 = vunpack.c.h.b16 %v156
    %v255 = vunpack.c.l.b16 %v157
    %v256 = vunpack.c.h.b16 %v157
    %v257 = vunpack.c.l.b16 %v158
    %v258 = vunpack.c.h.b16 %v158
    %v259 = vunpack.c.l.b16 %v159
    %v260 = vunpack.c.h.b16 %v159
    %v261 = vunpack.c.l.b16 %v160
    %v262 = vunpack.c.h.b16 %v160
    %v263 = vunpack.c.l.b16 %v161
    %v264 = vunpack.c.h.b16 %v161
    %v265 = vunpack.c.l.b16 %v162
    %v266 = vunpack.c.h.b16 %v162
    %v267 = vunpack.c.l.b16 %v163
    %v268 = vunpack.c.h.b16 %v163
    %v269 = vunpack.c.l.b16 %v164
    %v270 = vunpack.c.h.b16 %v164
    %v271 = vpack.c.b16 %v211, %v207
    %v272 = vpack.c.b16 %v212, %v208
    %v273 = vpack.c.b16 %v213, %v209
    %v274 = vpack.c.b16 %v214, %v210
    %v275 = vpack.c.b16 %v219, %v215
    %v276 = vpack.c.b16 %v220, %v216
    %v277 = vpack.c.b16 %v221, %v217
    %v278 = vpack.c.b16 %v222, %v218
    %v279 = vpack.c.b16 %v227, %v223
    %v280 = vpack.c.b16 %v228, %v224
    %v281 = vpack.c.b16 %v229, %v225
    %v282 = vpack.c.b16 %v230, %v226
    %v283 = vpack.c.b16 %v235, %v231
    %v284 = vpack.c.b16 %v236, %v232
    %v285 = vpack.c.b16 %v237, %v233
    %v286 = vpack.c.b16 %v238, %v234
    %v287 = vpack.c.b16 %v243, %v239
    %v288 = vpack.c.b16 %v244, %v240
    %v289 = vpack.c.b16 %v245, %v241
    %v290 = vpack.c.b16 %v246, %v242
    %v291 = vpack.c.b16 %v251, %v247
    %v292 = vpack.c.b16 %v252, %v248
    %v293 = vpack.c.b16 %v253, %v249
    %v294 = vpack.c.b16 %v254, %v250
    %v295 = vpack.c.b16 %v259, %v255
    %v296 = vpack.c.b16 %v260, %v256
    %v297 = vpack.c.b16 %v261, %v257
    %v298 = vpack.c.b16 %v262, %v258
    %v299 = vpack.c.b16 %v267, %v263
    %v300 = vpack.c.b16 %v268, %v264
    %v301 = vpack.c.b16 %v269, %v265
    %v302 = vpack.c.b16 %v270, %v266
    %335 = vmatpush.bf16.msra.mxu0 %v299
    %336 = vmatpush.bf16.msra.mxu0 %v295
    %337 = vmatpush.bf16.msra.mxu0 %v291
    %338 = vmatpush.bf16.msra.mxu0 %v287
    %339 = vmatpush.bf16.msra.mxu0 %v283
    %340 = vmatpush.bf16.msra.mxu0 %v279
    %341 = vmatpush.bf16.msra.mxu0 %v275
    %342 = vmatpush.bf16.msra.mxu0 %v271
    %343 = vmatmul.bf16.gmra.mxu0 %v132
    %v344 = vpop.f32.mrf.mxu0
    %v345 = vadd.f32 %v167, %v344
    %v346 = vpop.f32.mrf.mxu0
    %v347 = vadd.f32 %v167, %v346
    %348 = vdwg.mxu0
    %349 = vmatpush.bf16.msra.mxu0 %v300
    %350 = vmatpush.bf16.msra.mxu0 %v296
    %351 = vmatpush.bf16.msra.mxu0 %v292
    %352 = vmatpush.bf16.msra.mxu0 %v288
    %353 = vmatpush.bf16.msra.mxu0 %v284
    %354 = vmatpush.bf16.msra.mxu0 %v280
    %355 = vmatpush.bf16.msra.mxu0 %v276
    %356 = vmatpush.bf16.msra.mxu0 %v272
    %357 = vmatmul.bf16.gmra.mxu0 %v132
    %v358 = vpop.f32.mrf.mxu0
    %v359 = vadd.f32 %v168, %v358
    %v360 = vpop.f32.mrf.mxu0
    %v361 = vadd.f32 %v168, %v360
    %362 = vdwg.mxu0
    %363 = vmatpush.bf16.msra.mxu0 %v301
    %364 = vmatpush.bf16.msra.mxu0 %v297
    %365 = vmatpush.bf16.msra.mxu0 %v293
    %366 = vmatpush.bf16.msra.mxu0 %v289
    %367 = vmatpush.bf16.msra.mxu0 %v285
    %368 = vmatpush.bf16.msra.mxu0 %v281
    %369 = vmatpush.bf16.msra.mxu0 %v277
    %370 = vmatpush.bf16.msra.mxu0 %v273
    %371 = vmatmul.bf16.gmra.mxu0 %v132
    %v372 = vpop.f32.mrf.mxu0
    %v373 = vadd.f32 %v169, %v372
    %v374 = vpop.f32.mrf.mxu0
    %v375 = vadd.f32 %v169, %v374
    %376 = vdwg.mxu0
    %377 = vmatpush.bf16.msra.mxu0 %v302
    %378 = vmatpush.bf16.msra.mxu0 %v298
    %379 = vmatpush.bf16.msra.mxu0 %v294
    %380 = vmatpush.bf16.msra.mxu0 %v290
    %381 = vmatpush.bf16.msra.mxu0 %v286
    %382 = vmatpush.bf16.msra.mxu0 %v282
    %383 = vmatpush.bf16.msra.mxu0 %v278
    %384 = vmatpush.bf16.msra.mxu0 %v274
    %385 = vmatmul.bf16.gmra.mxu0 %v132
    %v386 = vpop.f32.mrf.mxu0
    %v387 = vadd.f32 %v170, %v386
    %v388 = vpop.f32.mrf.mxu0
    %v389 = vadd.f32 %v170, %v388
    %390 = vdwg.mxu0
    %v391 = vmax.f32 %v345, 0.0
    %v392 = vmax.f32 %v359, 0.0
    %v393 = vmax.f32 %v373, 0.0
    %v394 = vmax.f32 %v387, 0.0
    %v395 = vmax.f32 %v347, 0.0
    %v396 = vmax.f32 %v361, 0.0
    %v397 = vmax.f32 %v375, 0.0
    %v398 = vmax.f32 %v389, 0.0
    %v399 = vpack.c.bf16 %v395, %v391
    %v400 = vpack.c.bf16 %v396, %v392
    %v401 = vpack.c.bf16 %v397, %v393
    %v402 = vpack.c.bf16 %v398, %v394
    %403 = vmatpush.bf16.msra.mxu0 0
    %404 = vmatpush.bf16.msra.mxu0 0
    %405 = vmatpush.bf16.msra.mxu0 0
    %406 = vmatpush.bf16.msra.mxu0 0
    %407 = vmatpush.bf16.msra.mxu0 0
    %408 = vmatpush.bf16.msra.mxu0 0
    %409 = vmatpush.bf16.msra.mxu0 0
    %410 = vmatpush.bf16.msra.mxu0 %v399
    %411 = vmatmul.bf16.gmra.mxu0 %v116
    %v412 = vpop.f32.mrf.mxu0
    %v413 = vadd.f32 0.0, %v412
    %v414 = vpop.f32.mrf.mxu0
    %v415 = vadd.f32 0.0, %v414
    %416 = vdwg.mxu0
    %417 = vmatpush.bf16.msra.mxu0 0
    %418 = vmatpush.bf16.msra.mxu0 0
    %419 = vmatpush.bf16.msra.mxu0 0
    %420 = vmatpush.bf16.msra.mxu0 0
    %421 = vmatpush.bf16.msra.mxu0 0
    %422 = vmatpush.bf16.msra.mxu0 0
    %423 = vmatpush.bf16.msra.mxu0 0
    %424 = vmatpush.bf16.msra.mxu0 %v400
    %425 = vmatmul.bf16.gmra.mxu0 %v116
    %v426 = vpop.f32.mrf.mxu0
    %v427 = vadd.f32 0.0, %v426
    %v428 = vpop.f32.mrf.mxu0
    %v429 = vadd.f32 0.0, %v428
    %430 = vdwg.mxu0
    %431 = vmatpush.bf16.msra.mxu0 0
    %432 = vmatpush.bf16.msra.mxu0 0
    %433 = vmatpush.bf16.msra.mxu0 0
    %434 = vmatpush.bf16.msra.mxu0 0
    %435 = vmatpush.bf16.msra.mxu0 0
    %436 = vmatpush.bf16.msra.mxu0 0
    %437 = vmatpush.bf16.msra.mxu0 0
    %438 = vmatpush.bf16.msra.mxu0 %v401
    %439 = vmatmul.bf16.gmra.mxu0 %v116
    %v440 = vpop.f32.mrf.mxu0
    %v441 = vadd.f32 0.0, %v440
    %v442 = vpop.f32.mrf.mxu0
    %v443 = vadd.f32 0.0, %v442
    %444 = vdwg.mxu0
    %445 = vmatpush.bf16.msra.mxu0 0
    %446 = vmatpush.bf16.msra.mxu0 0
    %447 = vmatpush.bf16.msra.mxu0 0
    %448 = vmatpush.bf16.msra.mxu0 0
    %449 = vmatpush.bf16.msra.mxu0 0
    %450 = vmatpush.bf16.msra.mxu0 0
    %451 = vmatpush.bf16.msra.mxu0 0
    %452 = vmatpush.bf16.msra.mxu0 %v402
    %453 = vmatmul.bf16.gmra.mxu0 %v116
    %v454 = vpop.f32.mrf.mxu0
    %v455 = vadd.f32 0.0, %v454
    %v456 = vpop.f32.mrf.mxu0
    %v457 = vadd.f32 0.0, %v456
    %458 = vdwg.mxu0
    %v459 = vpack.c.bf16 %v415, %v413
    %v460 = vpack.c.bf16 %v429, %v427
    %v461 = vpack.c.bf16 %v443, %v441
    %v462 = vpack.c.bf16 %v457, %v455
    %v463 = vld [vmem:[#allocation4] sm:$0xff]
    %v464 = vld [vmem:[#allocation4 + $0x8] sm:$0xff]
    %v465 = vld [vmem:[#allocation4 + $0x10] sm:$0xff]
    %v466 = vld [vmem:[#allocation4 + $0x18] sm:$0xff]
    %v467 = vld [vmem:[#allocation4 + $0x20] sm:$0xff]
    %v468 = vld [vmem:[#allocation4 + $0x28] sm:$0xff]
    %v469 = vld [vmem:[#allocation4 + $0x30] sm:$0xff]
    %v470 = vld [vmem:[#allocation4 + $0x38] sm:$0xff]
    %v471 = vld [vmem:[#allocation4 + $0x40] sm:$0xff]
    %v472 = vld [vmem:[#allocation4 + $0x48] sm:$0xff]
    %v473 = vld [vmem:[#allocation4 + $0x50] sm:$0xff]
    %v474 = vld [vmem:[#allocation4 + $0x58] sm:$0xff]
    %v475 = vld [vmem:[#allocation4 + $0x60] sm:$0xff]
    %v476 = vld [vmem:[#allocation4 + $0x68] sm:$0xff]
    %v477 = vld [vmem:[#allocation4 + $0x70] sm:$0xff]
    %v478 = vld [vmem:[#allocation4 + $0x78] sm:$0xff]
    %v479 = vld [vmem:[#allocation4 + $0x80] sm:$0xff]
    %v480 = vld [vmem:[#allocation4 + $0x88] sm:$0xff]
    %v481 = vld [vmem:[#allocation4 + $0x90] sm:$0xff]
    %v482 = vld [vmem:[#allocation4 + $0x98] sm:$0xff]
    %v483 = vld [vmem:[#allocation4 + $0xa0] sm:$0xff]
    %v484 = vld [vmem:[#allocation4 + $0xa8] sm:$0xff]
    %v485 = vld [vmem:[#allocation4 + $0xb0] sm:$0xff]
    %v486 = vld [vmem:[#allocation4 + $0xb8] sm:$0xff]
    %v487 = vld [vmem:[#allocation4 + $0xc0] sm:$0xff]
    %v488 = vld [vmem:[#allocation4 + $0xc8] sm:$0xff]
    %v489 = vld [vmem:[#allocation4 + $0xd0] sm:$0xff]
    %v490 = vld [vmem:[#allocation4 + $0xd8] sm:$0xff]
    %v491 = vld [vmem:[#allocation4 + $0xe0] sm:$0xff]
    %v492 = vld [vmem:[#allocation4 + $0xe8] sm:$0xff]
    %v493 = vld [vmem:[#allocation4 + $0xf0] sm:$0xff]
    %v494 = vld [vmem:[#allocation4 + $0xf8] sm:$0xff]
    %v495 = vld [vmem:[#allocation4 + $0x100] sm:$0xff]
    %v496 = vld [vmem:[#allocation4 + $0x108] sm:$0xff]
    %v497 = vld [vmem:[#allocation4 + $0x110] sm:$0xff]
    %v498 = vld [vmem:[#allocation4 + $0x118] sm:$0xff]
    %v499 = vld [vmem:[#allocation4 + $0x120] sm:$0xff]
    %v500 = vld [vmem:[#allocation4 + $0x128] sm:$0xff]
    %v501 = vld [vmem:[#allocation4 + $0x130] sm:$0xff]
    %v502 = vld [vmem:[#allocation4 + $0x138] sm:$0xff]
    %v503 = vld [vmem:[#allocation4 + $0x140] sm:$0xff]
    %v504 = vld [vmem:[#allocation4 + $0x148] sm:$0xff]
    %v505 = vld [vmem:[#allocation4 + $0x150] sm:$0xff]
    %v506 = vld [vmem:[#allocation4 + $0x158] sm:$0xff]
    %v507 = vld [vmem:[#allocation4 + $0x160] sm:$0xff]
    %v508 = vld [vmem:[#allocation4 + $0x168] sm:$0xff]
    %v509 = vld [vmem:[#allocation4 + $0x170] sm:$0xff]
    %v510 = vld [vmem:[#allocation4 + $0x178] sm:$0xff]
    %v511 = vld [vmem:[#allocation4 + $0x180] sm:$0xff]
    %v512 = vld [vmem:[#allocation4 + $0x188] sm:$0xff]
    %v513 = vld [vmem:[#allocation4 + $0x190] sm:$0xff]
    %v514 = vld [vmem:[#allocation4 + $0x198] sm:$0xff]
    %v515 = vld [vmem:[#allocation4 + $0x1a0] sm:$0xff]
    %v516 = vld [vmem:[#allocation4 + $0x1a8] sm:$0xff]
    %v517 = vld [vmem:[#allocation4 + $0x1b0] sm:$0xff]
    %v518 = vld [vmem:[#allocation4 + $0x1b8] sm:$0xff]
    %v519 = vld [vmem:[#allocation4 + $0x1c0] sm:$0xff]
    %v520 = vld [vmem:[#allocation4 + $0x1c8] sm:$0xff]
    %v521 = vld [vmem:[#allocation4 + $0x1d0] sm:$0xff]
    %v522 = vld [vmem:[#allocation4 + $0x1d8] sm:$0xff]
    %v523 = vld [vmem:[#allocation4 + $0x1e0] sm:$0xff]
    %v524 = vld [vmem:[#allocation4 + $0x1e8] sm:$0xff]
    %v525 = vld [vmem:[#allocation4 + $0x1f0] sm:$0xff]
    %v526 = vld [vmem:[#allocation4 + $0x1f8] sm:$0xff]
    %v527 = vld [vmem:[#allocation4 + $0x200] sm:$0xff]
    %v528 = vld [vmem:[#allocation4 + $0x208] sm:$0xff]
    %v529 = vld [vmem:[#allocation4 + $0x210] sm:$0xff]
    %v530 = vld [vmem:[#allocation4 + $0x218] sm:$0xff]
    %v531 = vld [vmem:[#allocation4 + $0x220] sm:$0xff]
    %v532 = vld [vmem:[#allocation4 + $0x228] sm:$0xff]
    %v533 = vld [vmem:[#allocation4 + $0x230] sm:$0xff]
    %v534 = vld [vmem:[#allocation4 + $0x238] sm:$0xff]
    %v535 = vld [vmem:[#allocation4 + $0x240] sm:$0xff]
    %v536 = vld [vmem:[#allocation4 + $0x248] sm:$0xff]
    %v537 = vld [vmem:[#allocation4 + $0x250] sm:$0xff]
    %v538 = vld [vmem:[#allocation4 + $0x258] sm:$0xff]
    %v539 = vld [vmem:[#allocation4 + $0x260] sm:$0xff]
    %v540 = vld [vmem:[#allocation4 + $0x268] sm:$0xff]
    %v541 = vld [vmem:[#allocation4 + $0x270] sm:$0xff]
    %v542 = vld [vmem:[#allocation4 + $0x278] sm:$0xff]
    %v543 = vld [vmem:[#allocation4 + $0x280] sm:$0xff]
    %v544 = vld [vmem:[#allocation4 + $0x288] sm:$0xff]
    %v545 = vld [vmem:[#allocation4 + $0x290] sm:$0xff]
    %v546 = vld [vmem:[#allocation4 + $0x298] sm:$0xff]
    %v547 = vld [vmem:[#allocation4 + $0x2a0] sm:$0xff]
    %v548 = vld [vmem:[#allocation4 + $0x2a8] sm:$0xff]
    %v549 = vld [vmem:[#allocation4 + $0x2b0] sm:$0xff]
    %v550 = vld [vmem:[#allocation4 + $0x2b8] sm:$0xff]
    %v551 = vld [vmem:[#allocation4 + $0x2c0] sm:$0xff]
    %v552 = vld [vmem:[#allocation4 + $0x2c8] sm:$0xff]
    %v553 = vld [vmem:[#allocation4 + $0x2d0] sm:$0xff]
    %v554 = vld [vmem:[#allocation4 + $0x2d8] sm:$0xff]
    %v555 = vld [vmem:[#allocation4 + $0x2e0] sm:$0xff]
    %v556 = vld [vmem:[#allocation4 + $0x2e8] sm:$0xff]
    %v557 = vld [vmem:[#allocation4 + $0x2f0] sm:$0xff]
    %v558 = vld [vmem:[#allocation4 + $0x2f8] sm:$0xff]
    %v559 = vld [vmem:[#allocation4 + $0x300] sm:$0xff]
    %v560 = vld [vmem:[#allocation4 + $0x308] sm:$0xff]
    %v561 = vld [vmem:[#allocation4 + $0x310] sm:$0xff]
    %v562 = vld [vmem:[#allocation4 + $0x318] sm:$0xff]
    %v563 = vld [vmem:[#allocation4 + $0x320] sm:$0xff]
    %v564 = vld [vmem:[#allocation4 + $0x328] sm:$0xff]
    %v565 = vld [vmem:[#allocation4 + $0x330] sm:$0xff]
    %v566 = vld [vmem:[#allocation4 + $0x338] sm:$0xff]
    %v567 = vld [vmem:[#allocation4 + $0x340] sm:$0xff]
    %v568 = vld [vmem:[#allocation4 + $0x348] sm:$0xff]
    %v569 = vld [vmem:[#allocation4 + $0x350] sm:$0xff]
    %v570 = vld [vmem:[#allocation4 + $0x358] sm:$0xff]
    %v571 = vld [vmem:[#allocation4 + $0x360] sm:$0xff]
    %v572 = vld [vmem:[#allocation4 + $0x368] sm:$0xff]
    %v573 = vld [vmem:[#allocation4 + $0x370] sm:$0xff]
    %v574 = vld [vmem:[#allocation4 + $0x378] sm:$0xff]
    %v575 = vld [vmem:[#allocation4 + $0x380] sm:$0xff]
    %v576 = vld [vmem:[#allocation4 + $0x388] sm:$0xff]
    %v577 = vld [vmem:[#allocation4 + $0x390] sm:$0xff]
    %v578 = vld [vmem:[#allocation4 + $0x398] sm:$0xff]
    %v579 = vld [vmem:[#allocation4 + $0x3a0] sm:$0xff]
    %v580 = vld [vmem:[#allocation4 + $0x3a8] sm:$0xff]
    %v581 = vld [vmem:[#allocation4 + $0x3b0] sm:$0xff]
    %v582 = vld [vmem:[#allocation4 + $0x3b8] sm:$0xff]
    %v583 = vld [vmem:[#allocation4 + $0x3c0] sm:$0xff]
    %v584 = vld [vmem:[#allocation4 + $0x3c8] sm:$0xff]
    %v585 = vld [vmem:[#allocation4 + $0x3d0] sm:$0xff]
    %v586 = vld [vmem:[#allocation4 + $0x3d8] sm:$0xff]
    %v587 = vld [vmem:[#allocation4 + $0x3e0] sm:$0xff]
    %v588 = vld [vmem:[#allocation4 + $0x3e8] sm:$0xff]
    %v589 = vld [vmem:[#allocation4 + $0x3f0] sm:$0xff]
    %v590 = vld [vmem:[#allocation4 + $0x3f8] sm:$0xff]
    %v591 = vld [vmem:[%s5] sm:$0xf]
    %v593 = vperm.slane %v591, 0
    %v594 = vperm.slane %v591, 1
    %v595 = vperm.slane %v591, 2
    %v596 = vperm.slane %v591, 3
    %v729 = vunpack.c.l.b16 %v463
    %v730 = vunpack.c.h.b16 %v463
    %v731 = vunpack.c.l.b16 %v464
    %v732 = vunpack.c.h.b16 %v464
    %v733 = vunpack.c.l.b16 %v465
    %v734 = vunpack.c.h.b16 %v465
    %v735 = vunpack.c.l.b16 %v466
    %v736 = vunpack.c.h.b16 %v466
    %v737 = vunpack.c.l.b16 %v467
    %v738 = vunpack.c.h.b16 %v467
    %v739 = vunpack.c.l.b16 %v468
    %v740 = vunpack.c.h.b16 %v468
    %v741 = vunpack.c.l.b16 %v469
    %v742 = vunpack.c.h.b16 %v469
    %v743 = vunpack.c.l.b16 %v470
    %v744 = vunpack.c.h.b16 %v470
    %v745 = vunpack.c.l.b16 %v471
    %v746 = vunpack.c.h.b16 %v471
    %v747 = vunpack.c.l.b16 %v472
    %v748 = vunpack.c.h.b16 %v472
    %v749 = vunpack.c.l.b16 %v473
    %v750 = vunpack.c.h.b16 %v473
    %v751 = vunpack.c.l.b16 %v474
    %v752 = vunpack.c.h.b16 %v474
    %v753 = vunpack.c.l.b16 %v475
    %v754 = vunpack.c.h.b16 %v475
    %v755 = vunpack.c.l.b16 %v476
    %v756 = vunpack.c.h.b16 %v476
    %v757 = vunpack.c.l.b16 %v477
    %v758 = vunpack.c.h.b16 %v477
    %v759 = vunpack.c.l.b16 %v478
    %v760 = vunpack.c.h.b16 %v478
    %v761 = vunpack.c.l.b16 %v479
    %v762 = vunpack.c.h.b16 %v479
    %v763 = vunpack.c.l.b16 %v480
    %v764 = vunpack.c.h.b16 %v480
    %v765 = vunpack.c.l.b16 %v481
    %v766 = vunpack.c.h.b16 %v481
    %v767 = vunpack.c.l.b16 %v482
    %v768 = vunpack.c.h.b16 %v482
    %v769 = vunpack.c.l.b16 %v483
    %v770 = vunpack.c.h.b16 %v483
    %v771 = vunpack.c.l.b16 %v484
    %v772 = vunpack.c.h.b16 %v484
    %v773 = vunpack.c.l.b16 %v485
    %v774 = vunpack.c.h.b16 %v485
    %v775 = vunpack.c.l.b16 %v486
    %v776 = vunpack.c.h.b16 %v486
    %v777 = vunpack.c.l.b16 %v487
    %v778 = vunpack.c.h.b16 %v487
    %v779 = vunpack.c.l.b16 %v488
    %v780 = vunpack.c.h.b16 %v488
    %v781 = vunpack.c.l.b16 %v489
    %v782 = vunpack.c.h.b16 %v489
    %v783 = vunpack.c.l.b16 %v490
    %v784 = vunpack.c.h.b16 %v490
    %v785 = vunpack.c.l.b16 %v491
    %v786 = vunpack.c.h.b16 %v491
    %v787 = vunpack.c.l.b16 %v492
    %v788 = vunpack.c.h.b16 %v492
    %v789 = vunpack.c.l.b16 %v493
    %v790 = vunpack.c.h.b16 %v493
    %v791 = vunpack.c.l.b16 %v494
    %v792 = vunpack.c.h.b16 %v494
    %v793 = vunpack.c.l.b16 %v495
    %v794 = vunpack.c.h.b16 %v495
    %v795 = vunpack.c.l.b16 %v496
    %v796 = vunpack.c.h.b16 %v496
    %v797 = vunpack.c.l.b16 %v497
    %v798 = vunpack.c.h.b16 %v497
    %v799 = vunpack.c.l.b16 %v498
    %v800 = vunpack.c.h.b16 %v498
    %v801 = vunpack.c.l.b16 %v499
    %v802 = vunpack.c.h.b16 %v499
    %v803 = vunpack.c.l.b16 %v500
    %v804 = vunpack.c.h.b16 %v500
    %v805 = vunpack.c.l.b16 %v501
    %v806 = vunpack.c.h.b16 %v501
    %v807 = vunpack.c.l.b16 %v502
    %v808 = vunpack.c.h.b16 %v502
    %v809 = vunpack.c.l.b16 %v503
    %v810 = vunpack.c.h.b16 %v503
    %v811 = vunpack.c.l.b16 %v504
    %v812 = vunpack.c.h.b16 %v504
    %v813 = vunpack.c.l.b16 %v505
    %v814 = vunpack.c.h.b16 %v505
    %v815 = vunpack.c.l.b16 %v506
    %v816 = vunpack.c.h.b16 %v506
    %v817 = vunpack.c.l.b16 %v507
    %v818 = vunpack.c.h.b16 %v507
    %v819 = vunpack.c.l.b16 %v508
    %v820 = vunpack.c.h.b16 %v508
    %v821 = vunpack.c.l.b16 %v509
    %v822 = vunpack.c.h.b16 %v509
    %v823 = vunpack.c.l.b16 %v510
    %v824 = vunpack.c.h.b16 %v510
    %v825 = vunpack.c.l.b16 %v511
    %v826 = vunpack.c.h.b16 %v511
    %v827 = vunpack.c.l.b16 %v512
    %v828 = vunpack.c.h.b16 %v512
    %v829 = vunpack.c.l.b16 %v513
    %v830 = vunpack.c.h.b16 %v513
    %v831 = vunpack.c.l.b16 %v514
    %v832 = vunpack.c.h.b16 %v514
    %v833 = vunpack.c.l.b16 %v515
    %v834 = vunpack.c.h.b16 %v515
    %v835 = vunpack.c.l.b16 %v516
    %v836 = vunpack.c.h.b16 %v516
    %v837 = vunpack.c.l.b16 %v517
    %v838 = vunpack.c.h.b16 %v517
    %v839 = vunpack.c.l.b16 %v518
    %v840 = vunpack.c.h.b16 %v518
    %v841 = vunpack.c.l.b16 %v519
    %v842 = vunpack.c.h.b16 %v519
    %v843 = vunpack.c.l.b16 %v520
    %v844 = vunpack.c.h.b16 %v520
    %v845 = vunpack.c.l.b16 %v521
    %v846 = vunpack.c.h.b16 %v521
    %v847 = vunpack.c.l.b16 %v522
    %v848 = vunpack.c.h.b16 %v522
    %v849 = vunpack.c.l.b16 %v523
    %v850 = vunpack.c.h.b16 %v523
    %v851 = vunpack.c.l.b16 %v524
    %v852 = vunpack.c.h.b16 %v524
    %v853 = vunpack.c.l.b16 %v525
    %v854 = vunpack.c.h.b16 %v525
    %v855 = vunpack.c.l.b16 %v526
    %v856 = vunpack.c.h.b16 %v526
    %v857 = vunpack.c.l.b16 %v527
    %v858 = vunpack.c.h.b16 %v527
    %v859 = vunpack.c.l.b16 %v528
    %v860 = vunpack.c.h.b16 %v528
    %v861 = vunpack.c.l.b16 %v529
    %v862 = vunpack.c.h.b16 %v529
    %v863 = vunpack.c.l.b16 %v530
    %v864 = vunpack.c.h.b16 %v530
    %v865 = vunpack.c.l.b16 %v531
    %v866 = vunpack.c.h.b16 %v531
    %v867 = vunpack.c.l.b16 %v532
    %v868 = vunpack.c.h.b16 %v532
    %v869 = vunpack.c.l.b16 %v533
    %v870 = vunpack.c.h.b16 %v533
    %v871 = vunpack.c.l.b16 %v534
    %v872 = vunpack.c.h.b16 %v534
    %v873 = vunpack.c.l.b16 %v535
    %v874 = vunpack.c.h.b16 %v535
    %v875 = vunpack.c.l.b16 %v536
    %v876 = vunpack.c.h.b16 %v536
    %v877 = vunpack.c.l.b16 %v537
    %v878 = vunpack.c.h.b16 %v537
    %v879 = vunpack.c.l.b16 %v538
    %v880 = vunpack.c.h.b16 %v538
    %v881 = vunpack.c.l.b16 %v539
    %v882 = vunpack.c.h.b16 %v539
    %v883 = vunpack.c.l.b16 %v540
    %v884 = vunpack.c.h.b16 %v540
    %v885 = vunpack.c.l.b16 %v541
    %v886 = vunpack.c.h.b16 %v541
    %v887 = vunpack.c.l.b16 %v542
    %v888 = vunpack.c.h.b16 %v542
    %v889 = vunpack.c.l.b16 %v543
    %v890 = vunpack.c.h.b16 %v543
    %v891 = vunpack.c.l.b16 %v544
    %v892 = vunpack.c.h.b16 %v544
    %v893 = vunpack.c.l.b16 %v545
    %v894 = vunpack.c.h.b16 %v545
    %v895 = vunpack.c.l.b16 %v546
    %v896 = vunpack.c.h.b16 %v546
    %v897 = vunpack.c.l.b16 %v547
    %v898 = vunpack.c.h.b16 %v547
    %v899 = vunpack.c.l.b16 %v548
    %v900 = vunpack.c.h.b16 %v548
    %v901 = vunpack.c.l.b16 %v549
    %v902 = vunpack.c.h.b16 %v549
    %v903 = vunpack.c.l.b16 %v550
    %v904 = vunpack.c.h.b16 %v550
    %v905 = vunpack.c.l.b16 %v551
    %v906 = vunpack.c.h.b16 %v551
    %v907 = vunpack.c.l.b16 %v552
    %v908 = vunpack.c.h.b16 %v552
    %v909 = vunpack.c.l.b16 %v553
    %v910 = vunpack.c.h.b16 %v553
    %v911 = vunpack.c.l.b16 %v554
    %v912 = vunpack.c.h.b16 %v554
    %v913 = vunpack.c.l.b16 %v555
    %v914 = vunpack.c.h.b16 %v555
    %v915 = vunpack.c.l.b16 %v556
    %v916 = vunpack.c.h.b16 %v556
    %v917 = vunpack.c.l.b16 %v557
    %v918 = vunpack.c.h.b16 %v557
    %v919 = vunpack.c.l.b16 %v558
    %v920 = vunpack.c.h.b16 %v558
    %v921 = vunpack.c.l.b16 %v559
    %v922 = vunpack.c.h.b16 %v559
    %v923 = vunpack.c.l.b16 %v560
    %v924 = vunpack.c.h.b16 %v560
    %v925 = vunpack.c.l.b16 %v561
    %v926 = vunpack.c.h.b16 %v561
    %v927 = vunpack.c.l.b16 %v562
    %v928 = vunpack.c.h.b16 %v562
    %v929 = vunpack.c.l.b16 %v563
    %v930 = vunpack.c.h.b16 %v563
    %v931 = vunpack.c.l.b16 %v564
    %v932 = vunpack.c.h.b16 %v564
    %v933 = vunpack.c.l.b16 %v565
    %v934 = vunpack.c.h.b16 %v565
    %v935 = vunpack.c.l.b16 %v566
    %v936 = vunpack.c.h.b16 %v566
    %v937 = vunpack.c.l.b16 %v567
    %v938 = vunpack.c.h.b16 %v567
    %v939 = vunpack.c.l.b16 %v568
    %v940 = vunpack.c.h.b16 %v568
    %v941 = vunpack.c.l.b16 %v569
    %v942 = vunpack.c.h.b16 %v569
    %v943 = vunpack.c.l.b16 %v570
    %v944 = vunpack.c.h.b16 %v570
    %v945 = vunpack.c.l.b16 %v571
    %v946 = vunpack.c.h.b16 %v571
    %v947 = vunpack.c.l.b16 %v572
    %v948 = vunpack.c.h.b16 %v572
    %v949 = vunpack.c.l.b16 %v573
    %v950 = vunpack.c.h.b16 %v573
    %v951 = vunpack.c.l.b16 %v574
    %v952 = vunpack.c.h.b16 %v574
    %v953 = vunpack.c.l.b16 %v575
    %v954 = vunpack.c.h.b16 %v575
    %v955 = vunpack.c.l.b16 %v576
    %v956 = vunpack.c.h.b16 %v576
    %v957 = vunpack.c.l.b16 %v577
    %v958 = vunpack.c.h.b16 %v577
    %v959 = vunpack.c.l.b16 %v578
    %v960 = vunpack.c.h.b16 %v578
    %v961 = vunpack.c.l.b16 %v579
    %v962 = vunpack.c.h.b16 %v579
    %v963 = vunpack.c.l.b16 %v580
    %v964 = vunpack.c.h.b16 %v580
    %v965 = vunpack.c.l.b16 %v581
    %v966 = vunpack.c.h.b16 %v581
    %v967 = vunpack.c.l.b16 %v582
    %v968 = vunpack.c.h.b16 %v582
    %v969 = vunpack.c.l.b16 %v583
    %v970 = vunpack.c.h.b16 %v583
    %v971 = vunpack.c.l.b16 %v584
    %v972 = vunpack.c.h.b16 %v584
    %v973 = vunpack.c.l.b16 %v585
    %v974 = vunpack.c.h.b16 %v585
    %v975 = vunpack.c.l.b16 %v586
    %v976 = vunpack.c.h.b16 %v586
    %v977 = vunpack.c.l.b16 %v587
    %v978 = vunpack.c.h.b16 %v587
    %v979 = vunpack.c.l.b16 %v588
    %v980 = vunpack.c.h.b16 %v588
    %v981 = vunpack.c.l.b16 %v589
    %v982 = vunpack.c.h.b16 %v589
    %v983 = vunpack.c.l.b16 %v590
    %v984 = vunpack.c.h.b16 %v590
    %v985 = vpack.c.b16 %v733, %v729
    %v986 = vpack.c.b16 %v734, %v730
    %v987 = vpack.c.b16 %v735, %v731
    %v988 = vpack.c.b16 %v736, %v732
    %v989 = vpack.c.b16 %v741, %v737
    %v990 = vpack.c.b16 %v742, %v738
    %v991 = vpack.c.b16 %v743, %v739
    %v992 = vpack.c.b16 %v744, %v740
    %v993 = vpack.c.b16 %v749, %v745
    %v994 = vpack.c.b16 %v750, %v746
    %v995 = vpack.c.b16 %v751, %v747
    %v996 = vpack.c.b16 %v752, %v748
    %v997 = vpack.c.b16 %v757, %v753
    %v998 = vpack.c.b16 %v758, %v754
    %v999 = vpack.c.b16 %v759, %v755
    %v1000 = vpack.c.b16 %v760, %v756
    %v1001 = vpack.c.b16 %v765, %v761
    %v1002 = vpack.c.b16 %v766, %v762
    %v1003 = vpack.c.b16 %v767, %v763
    %v1004 = vpack.c.b16 %v768, %v764
    %v1005 = vpack.c.b16 %v773, %v769
    %v1006 = vpack.c.b16 %v774, %v770
    %v1007 = vpack.c.b16 %v775, %v771
    %v1008 = vpack.c.b16 %v776, %v772
    %v1009 = vpack.c.b16 %v781, %v777
    %v1010 = vpack.c.b16 %v782, %v778
    %v1011 = vpack.c.b16 %v783, %v779
    %v1012 = vpack.c.b16 %v784, %v780
    %v1013 = vpack.c.b16 %v789, %v785
    %v1014 = vpack.c.b16 %v790, %v786
    %v1015 = vpack.c.b16 %v791, %v787
    %v1016 = vpack.c.b16 %v792, %v788
    %v1017 = vpack.c.b16 %v797, %v793
    %v1018 = vpack.c.b16 %v798, %v794
    %v1019 = vpack.c.b16 %v799, %v795
    %v1020 = vpack.c.b16 %v800, %v796
    %v1021 = vpack.c.b16 %v805, %v801
    %v1022 = vpack.c.b16 %v806, %v802
    %v1023 = vpack.c.b16 %v807, %v803
    %v1024 = vpack.c.b16 %v808, %v804
    %v1025 = vpack.c.b16 %v813, %v809
    %v1026 = vpack.c.b16 %v814, %v810
    %v1027 = vpack.c.b16 %v815, %v811
    %v1028 = vpack.c.b16 %v816, %v812
    %v1029 = vpack.c.b16 %v821, %v817
    %v1030 = vpack.c.b16 %v822, %v818
    %v1031 = vpack.c.b16 %v823, %v819
    %v1032 = vpack.c.b16 %v824, %v820
    %v1033 = vpack.c.b16 %v829, %v825
    %v1034 = vpack.c.b16 %v830, %v826
    %v1035 = vpack.c.b16 %v831, %v827
    %v1036 = vpack.c.b16 %v832, %v828
    %v1037 = vpack.c.b16 %v837, %v833
    %v1038 = vpack.c.b16 %v838, %v834
    %v1039 = vpack.c.b16 %v839, %v835
    %v1040 = vpack.c.b16 %v840, %v836
    %v1041 = vpack.c.b16 %v845, %v841
    %v1042 = vpack.c.b16 %v846, %v842
    %v1043 = vpack.c.b16 %v847, %v843
    %v1044 = vpack.c.b16 %v848, %v844
    %v1045 = vpack.c.b16 %v853, %v849
    %v1046 = vpack.c.b16 %v854, %v850
    %v1047 = vpack.c.b16 %v855, %v851
    %v1048 = vpack.c.b16 %v856, %v852
    %v1049 = vpack.c.b16 %v861, %v857
    %v1050 = vpack.c.b16 %v862, %v858
    %v1051 = vpack.c.b16 %v863, %v859
    %v1052 = vpack.c.b16 %v864, %v860
    %v1053 = vpack.c.b16 %v869, %v865
    %v1054 = vpack.c.b16 %v870, %v866
    %v1055 = vpack.c.b16 %v871, %v867
    %v1056 = vpack.c.b16 %v872, %v868
    %v1057 = vpack.c.b16 %v877, %v873
    %v1058 = vpack.c.b16 %v878, %v874
    %v1059 = vpack.c.b16 %v879, %v875
    %v1060 = vpack.c.b16 %v880, %v876
    %v1061 = vpack.c.b16 %v885, %v881
    %v1062 = vpack.c.b16 %v886, %v882
    %v1063 = vpack.c.b16 %v887, %v883
    %v1064 = vpack.c.b16 %v888, %v884
    %v1065 = vpack.c.b16 %v893, %v889
    %v1066 = vpack.c.b16 %v894, %v890
    %v1067 = vpack.c.b16 %v895, %v891
    %v1068 = vpack.c.b16 %v896, %v892
    %v1069 = vpack.c.b16 %v901, %v897
    %v1070 = vpack.c.b16 %v902, %v898
    %v1071 = vpack.c.b16 %v903, %v899
    %v1072 = vpack.c.b16 %v904, %v900
    %v1073 = vpack.c.b16 %v909, %v905
    %v1074 = vpack.c.b16 %v910, %v906
    %v1075 = vpack.c.b16 %v911, %v907
    %v1076 = vpack.c.b16 %v912, %v908
    %v1077 = vpack.c.b16 %v917, %v913
    %v1078 = vpack.c.b16 %v918, %v914
    %v1079 = vpack.c.b16 %v919, %v915
    %v1080 = vpack.c.b16 %v920, %v916
    %v1081 = vpack.c.b16 %v925, %v921
    %v1082 = vpack.c.b16 %v926, %v922
    %v1083 = vpack.c.b16 %v927, %v923
    %v1084 = vpack.c.b16 %v928, %v924
    %v1085 = vpack.c.b16 %v933, %v929
    %v1086 = vpack.c.b16 %v934, %v930
    %v1087 = vpack.c.b16 %v935, %v931
    %v1088 = vpack.c.b16 %v936, %v932
    %v1089 = vpack.c.b16 %v941, %v937
    %v1090 = vpack.c.b16 %v942, %v938
    %v1091 = vpack.c.b16 %v943, %v939
    %v1092 = vpack.c.b16 %v944, %v940
    %v1093 = vpack.c.b16 %v949, %v945
    %v1094 = vpack.c.b16 %v950, %v946
    %v1095 = vpack.c.b16 %v951, %v947
    %v1096 = vpack.c.b16 %v952, %v948
    %v1097 = vpack.c.b16 %v957, %v953
    %v1098 = vpack.c.b16 %v958, %v954
    %v1099 = vpack.c.b16 %v959, %v955
    %v1100 = vpack.c.b16 %v960, %v956
    %v1101 = vpack.c.b16 %v965, %v961
    %v1102 = vpack.c.b16 %v966, %v962
    %v1103 = vpack.c.b16 %v967, %v963
    %v1104 = vpack.c.b16 %v968, %v964
    %v1105 = vpack.c.b16 %v973, %v969
    %v1106 = vpack.c.b16 %v974, %v970
    %v1107 = vpack.c.b16 %v975, %v971
    %v1108 = vpack.c.b16 %v976, %v972
    %v1109 = vpack.c.b16 %v981, %v977
    %v1110 = vpack.c.b16 %v982, %v978
    %v1111 = vpack.c.b16 %v983, %v979
    %v1112 = vpack.c.b16 %v984, %v980
    %1241 = vmatpush.bf16.msra.mxu0 %v1013
    %1242 = vmatpush.bf16.msra.mxu0 %v1009
    %1243 = vmatpush.bf16.msra.mxu0 %v1005
    %1244 = vmatpush.bf16.msra.mxu0 %v1001
    %1245 = vmatpush.bf16.msra.mxu0 %v997
    %1246 = vmatpush.bf16.msra.mxu0 %v993
    %1247 = vmatpush.bf16.msra.mxu0 %v989
    %1248 = vmatpush.bf16.msra.mxu0 %v985
    %1249 = vmatmul.bf16.gmra.mxu0 %v459
    %v1250 = vpop.f32.mrf.mxu0
    %v1251 = vadd.f32 %v593, %v1250
    %v1252 = vpop.f32.mrf.mxu0
    %v1253 = vadd.f32 %v593, %v1252
    %1254 = vdwg.mxu0
    %1255 = vmatpush.bf16.msra.mxu0 %v1045
    %1256 = vmatpush.bf16.msra.mxu0 %v1041
    %1257 = vmatpush.bf16.msra.mxu0 %v1037
    %1258 = vmatpush.bf16.msra.mxu0 %v1033
    %1259 = vmatpush.bf16.msra.mxu0 %v1029
    %1260 = vmatpush.bf16.msra.mxu0 %v1025
    %1261 = vmatpush.bf16.msra.mxu0 %v1021
    %1262 = vmatpush.bf16.msra.mxu0 %v1017
    %1263 = vmatmul.bf16.gmra.mxu0 %v460
    %v1264 = vpop.f32.mrf.mxu0
    %v1265 = vadd.f32 %v1251, %v1264
    %v1266 = vpop.f32.mrf.mxu0
    %v1267 = vadd.f32 %v1253, %v1266
    %1268 = vdwg.mxu0
    %1269 = vmatpush.bf16.msra.mxu0 %v1077
    %1270 = vmatpush.bf16.msra.mxu0 %v1073
    %1271 = vmatpush.bf16.msra.mxu0 %v1069
    %1272 = vmatpush.bf16.msra.mxu0 %v1065
    %1273 = vmatpush.bf16.msra.mxu0 %v1061
    %1274 = vmatpush.bf16.msra.mxu0 %v1057
    %1275 = vmatpush.bf16.msra.mxu0 %v1053
    %1276 = vmatpush.bf16.msra.mxu0 %v1049
    %1277 = vmatmul.bf16.gmra.mxu0 %v461
    %v1278 = vpop.f32.mrf.mxu0
    %v1279 = vadd.f32 %v1265, %v1278
    %v1280 = vpop.f32.mrf.mxu0
    %v1281 = vadd.f32 %v1267, %v1280
    %1282 = vdwg.mxu0
    %1283 = vmatpush.bf16.msra.mxu0 %v1109
    %1284 = vmatpush.bf16.msra.mxu0 %v1105
    %1285 = vmatpush.bf16.msra.mxu0 %v1101
    %1286 = vmatpush.bf16.msra.mxu0 %v1097
    %1287 = vmatpush.bf16.msra.mxu0 %v1093
    %1288 = vmatpush.bf16.msra.mxu0 %v1089
    %1289 = vmatpush.bf16.msra.mxu0 %v1085
    %1290 = vmatpush.bf16.msra.mxu0 %v1081
    %1291 = vmatmul.bf16.gmra.mxu0 %v462
    %v1292 = vpop.f32.mrf.mxu0
    %v1293 = vadd.f32 %v1279, %v1292
    %v1294 = vpop.f32.mrf.mxu0
    %v1295 = vadd.f32 %v1281, %v1294
    %1296 = vdwg.mxu0
    %1297 = vmatpush.bf16.msra.mxu0 %v1014
    %1298 = vmatpush.bf16.msra.mxu0 %v1010
    %1299 = vmatpush.bf16.msra.mxu0 %v1006
    %1300 = vmatpush.bf16.msra.mxu0 %v1002
    %1301 = vmatpush.bf16.msra.mxu0 %v998
    %1302 = vmatpush.bf16.msra.mxu0 %v994
    %1303 = vmatpush.bf16.msra.mxu0 %v990
    %1304 = vmatpush.bf16.msra.mxu0 %v986
    %1305 = vmatmul.bf16.gmra.mxu0 %v459
    %v1306 = vpop.f32.mrf.mxu0
    %v1307 = vadd.f32 %v594, %v1306
    %v1308 = vpop.f32.mrf.mxu0
    %v1309 = vadd.f32 %v594, %v1308
    %1310 = vdwg.mxu0
    %1311 = vmatpush.bf16.msra.mxu0 %v1046
    %1312 = vmatpush.bf16.msra.mxu0 %v1042
    %1313 = vmatpush.bf16.msra.mxu0 %v1038
    %1314 = vmatpush.bf16.msra.mxu0 %v1034
    %1315 = vmatpush.bf16.msra.mxu0 %v1030
    %1316 = vmatpush.bf16.msra.mxu0 %v1026
    %1317 = vmatpush.bf16.msra.mxu0 %v1022
    %1318 = vmatpush.bf16.msra.mxu0 %v1018
    %1319 = vmatmul.bf16.gmra.mxu0 %v460
    %v1320 = vpop.f32.mrf.mxu0
    %v1321 = vadd.f32 %v1307, %v1320
    %v1322 = vpop.f32.mrf.mxu0
    %v1323 = vadd.f32 %v1309, %v1322
    %1324 = vdwg.mxu0
    %1325 = vmatpush.bf16.msra.mxu0 %v1078
    %1326 = vmatpush.bf16.msra.mxu0 %v1074
    %1327 = vmatpush.bf16.msra.mxu0 %v1070
    %1328 = vmatpush.bf16.msra.mxu0 %v1066
    %1329 = vmatpush.bf16.msra.mxu0 %v1062
    %1330 = vmatpush.bf16.msra.mxu0 %v1058
    %1331 = vmatpush.bf16.msra.mxu0 %v1054
    %1332 = vmatpush.bf16.msra.mxu0 %v1050
    %1333 = vmatmul.bf16.gmra.mxu0 %v461
    %v1334 = vpop.f32.mrf.mxu0
    %v1335 = vadd.f32 %v1321, %v1334
    %v1336 = vpop.f32.mrf.mxu0
    %v1337 = vadd.f32 %v1323, %v1336
    %1338 = vdwg.mxu0
    %1339 = vmatpush.bf16.msra.mxu0 %v1110
    %1340 = vmatpush.bf16.msra.mxu0 %v1106
    %1341 = vmatpush.bf16.msra.mxu0 %v1102
    %1342 = vmatpush.bf16.msra.mxu0 %v1098
    %1343 = vmatpush.bf16.msra.mxu0 %v1094
    %1344 = vmatpush.bf16.msra.mxu0 %v1090
    %1345 = vmatpush.bf16.msra.mxu0 %v1086
    %1346 = vmatpush.bf16.msra.mxu0 %v1082
    %1347 = vmatmul.bf16.gmra.mxu0 %v462
    %v1348 = vpop.f32.mrf.mxu0
    %v1349 = vadd.f32 %v1335, %v1348
    %v1350 = vpop.f32.mrf.mxu0
    %v1351 = vadd.f32 %v1337, %v1350
    %1352 = vdwg.mxu0
    %1353 = vmatpush.bf16.msra.mxu0 %v1015
    %1354 = vmatpush.bf16.msra.mxu0 %v1011
    %1355 = vmatpush.bf16.msra.mxu0 %v1007
    %1356 = vmatpush.bf16.msra.mxu0 %v1003
    %1357 = vmatpush.bf16.msra.mxu0 %v999
    %1358 = vmatpush.bf16.msra.mxu0 %v995
    %1359 = vmatpush.bf16.msra.mxu0 %v991
    %1360 = vmatpush.bf16.msra.mxu0 %v987
    %1361 = vmatmul.bf16.gmra.mxu0 %v459
    %v1362 = vpop.f32.mrf.mxu0
    %v1363 = vadd.f32 %v595, %v1362
    %v1364 = vpop.f32.mrf.mxu0
    %v1365 = vadd.f32 %v595, %v1364
    %1366 = vdwg.mxu0
    %1367 = vmatpush.bf16.msra.mxu0 %v1047
    %1368 = vmatpush.bf16.msra.mxu0 %v1043
    %1369 = vmatpush.bf16.msra.mxu0 %v1039
    %1370 = vmatpush.bf16.msra.mxu0 %v1035
    %1371 = vmatpush.bf16.msra.mxu0 %v1031
    %1372 = vmatpush.bf16.msra.mxu0 %v1027
    %1373 = vmatpush.bf16.msra.mxu0 %v1023
    %1374 = vmatpush.bf16.msra.mxu0 %v1019
    %1375 = vmatmul.bf16.gmra.mxu0 %v460
    %v1376 = vpop.f32.mrf.mxu0
    %v1377 = vadd.f32 %v1363, %v1376
    %v1378 = vpop.f32.mrf.mxu0
    %v1379 = vadd.f32 %v1365, %v1378
    %1380 = vdwg.mxu0
    %1381 = vmatpush.bf16.msra.mxu0 %v1079
    %1382 = vmatpush.bf16.msra.mxu0 %v1075
    %1383 = vmatpush.bf16.msra.mxu0 %v1071
    %1384 = vmatpush.bf16.msra.mxu0 %v1067
    %1385 = vmatpush.bf16.msra.mxu0 %v1063
    %1386 = vmatpush.bf16.msra.mxu0 %v1059
    %1387 = vmatpush.bf16.msra.mxu0 %v1055
    %1388 = vmatpush.bf16.msra.mxu0 %v1051
    %1389 = vmatmul.bf16.gmra.mxu0 %v461
    %v1390 = vpop.f32.mrf.mxu0
    %v1391 = vadd.f32 %v1377, %v1390
    %v1392 = vpop.f32.mrf.mxu0
    %v1393 = vadd.f32 %v1379, %v1392
    %1394 = vdwg.mxu0
    %1395 = vmatpush.bf16.msra.mxu0 %v1111
    %1396 = vmatpush.bf16.msra.mxu0 %v1107
    %1397 = vmatpush.bf16.msra.mxu0 %v1103
    %1398 = vmatpush.bf16.msra.mxu0 %v1099
    %1399 = vmatpush.bf16.msra.mxu0 %v1095
    %1400 = vmatpush.bf16.msra.mxu0 %v1091
    %1401 = vmatpush.bf16.msra.mxu0 %v1087
    %1402 = vmatpush.bf16.msra.mxu0 %v1083
    %1403 = vmatmul.bf16.gmra.mxu0 %v462
    %v1404 = vpop.f32.mrf.mxu0
    %v1405 = vadd.f32 %v1391, %v1404
    %v1406 = vpop.f32.mrf.mxu0
    %v1407 = vadd.f32 %v1393, %v1406
    %1408 = vdwg.mxu0
    %1409 = vmatpush.bf16.msra.mxu0 %v1016
    %1410 = vmatpush.bf16.msra.mxu0 %v1012
    %1411 = vmatpush.bf16.msra.mxu0 %v1008
    %1412 = vmatpush.bf16.msra.mxu0 %v1004
    %1413 = vmatpush.bf16.msra.mxu0 %v1000
    %1414 = vmatpush.bf16.msra.mxu0 %v996
    %1415 = vmatpush.bf16.msra.mxu0 %v992
    %1416 = vmatpush.bf16.msra.mxu0 %v988
    %1417 = vmatmul.bf16.gmra.mxu0 %v459
    %v1418 = vpop.f32.mrf.mxu0
    %v1419 = vadd.f32 %v596, %v1418
    %v1420 = vpop.f32.mrf.mxu0
    %v1421 = vadd.f32 %v596, %v1420
    %1422 = vdwg.mxu0
    %1423 = vmatpush.bf16.msra.mxu0 %v1048
    %1424 = vmatpush.bf16.msra.mxu0 %v1044
    %1425 = vmatpush.bf16.msra.mxu0 %v1040
    %1426 = vmatpush.bf16.msra.mxu0 %v1036
    %1427 = vmatpush.bf16.msra.mxu0 %v1032
    %1428 = vmatpush.bf16.msra.mxu0 %v1028
    %1429 = vmatpush.bf16.msra.mxu0 %v1024
    %1430 = vmatpush.bf16.msra.mxu0 %v1020
    %1431 = vmatmul.bf16.gmra.mxu0 %v460
    %v1432 = vpop.f32.mrf.mxu0
    %v1433 = vadd.f32 %v1419, %v1432
    %v1434 = vpop.f32.mrf.mxu0
    %v1435 = vadd.f32 %v1421, %v1434
    %1436 = vdwg.mxu0
    %1437 = vmatpush.bf16.msra.mxu0 %v1080
    %1438 = vmatpush.bf16.msra.mxu0 %v1076
    %1439 = vmatpush.bf16.msra.mxu0 %v1072
    %1440 = vmatpush.bf16.msra.mxu0 %v1068
    %1441 = vmatpush.bf16.msra.mxu0 %v1064
    %1442 = vmatpush.bf16.msra.mxu0 %v1060
    %1443 = vmatpush.bf16.msra.mxu0 %v1056
    %1444 = vmatpush.bf16.msra.mxu0 %v1052
    %1445 = vmatmul.bf16.gmra.mxu0 %v461
    %v1446 = vpop.f32.mrf.mxu0
    %v1447 = vadd.f32 %v1433, %v1446
    %v1448 = vpop.f32.mrf.mxu0
    %v1449 = vadd.f32 %v1435, %v1448
    %1450 = vdwg.mxu0
    %1451 = vmatpush.bf16.msra.mxu0 %v1112
    %1452 = vmatpush.bf16.msra.mxu0 %v1108
    %1453 = vmatpush.bf16.msra.mxu0 %v1104
    %1454 = vmatpush.bf16.msra.mxu0 %v1100
    %1455 = vmatpush.bf16.msra.mxu0 %v1096
    %1456 = vmatpush.bf16.msra.mxu0 %v1092
    %1457 = vmatpush.bf16.msra.mxu0 %v1088
    %1458 = vmatpush.bf16.msra.mxu0 %v1084
    %1459 = vmatmul.bf16.gmra.mxu0 %v462
    %v1460 = vpop.f32.mrf.mxu0
    %v1461 = vadd.f32 %v1447, %v1460
    %v1462 = vpop.f32.mrf.mxu0
    %v1463 = vadd.f32 %v1449, %v1462
    %1464 = vdwg.mxu0
    %v1465 = vmax.f32 %v1293, 0.0
    %v1466 = vmax.f32 %v1349, 0.0
    %v1467 = vmax.f32 %v1405, 0.0
    %v1468 = vmax.f32 %v1461, 0.0
    %v1469 = vmax.f32 %v1295, 0.0
    %v1470 = vmax.f32 %v1351, 0.0
    %v1471 = vmax.f32 %v1407, 0.0
    %v1472 = vmax.f32 %v1463, 0.0
    %v1473 = vpack.c.bf16 %v1469, %v1465
    %v1474 = vpack.c.bf16 %v1470, %v1466
    %v1475 = vpack.c.bf16 %v1471, %v1467
    %v1476 = vpack.c.bf16 %v1472, %v1468
    %1477 = vmatpush.bf16.msra.mxu0 0
    %1478 = vmatpush.bf16.msra.mxu0 0
    %1479 = vmatpush.bf16.msra.mxu0 0
    %1480 = vmatpush.bf16.msra.mxu0 0
    %1481 = vmatpush.bf16.msra.mxu0 0
    %1482 = vmatpush.bf16.msra.mxu0 0
    %1483 = vmatpush.bf16.msra.mxu0 0
    %1484 = vmatpush.bf16.msra.mxu0 %v1473
    %1485 = vmatmul.bf16.gmra.mxu0 %v116
    %v1486 = vpop.f32.mrf.mxu0
    %v1487 = vadd.f32 0.0, %v1486
    %v1488 = vpop.f32.mrf.mxu0
    %v1489 = vadd.f32 0.0, %v1488
    %1490 = vdwg.mxu0
    %1491 = vmatpush.bf16.msra.mxu0 0
    %1492 = vmatpush.bf16.msra.mxu0 0
    %1493 = vmatpush.bf16.msra.mxu0 0
    %1494 = vmatpush.bf16.msra.mxu0 0
    %1495 = vmatpush.bf16.msra.mxu0 0
    %1496 = vmatpush.bf16.msra.mxu0 0
    %1497 = vmatpush.bf16.msra.mxu0 0
    %1498 = vmatpush.bf16.msra.mxu0 %v1474
    %1499 = vmatmul.bf16.gmra.mxu0 %v116
    %v1500 = vpop.f32.mrf.mxu0
    %v1501 = vadd.f32 0.0, %v1500
    %v1502 = vpop.f32.mrf.mxu0
    %v1503 = vadd.f32 0.0, %v1502
    %1504 = vdwg.mxu0
    %1505 = vmatpush.bf16.msra.mxu0 0
    %1506 = vmatpush.bf16.msra.mxu0 0
    %1507 = vmatpush.bf16.msra.mxu0 0
    %1508 = vmatpush.bf16.msra.mxu0 0
    %1509 = vmatpush.bf16.msra.mxu0 0
    %1510 = vmatpush.bf16.msra.mxu0 0
    %1511 = vmatpush.bf16.msra.mxu0 0
    %1512 = vmatpush.bf16.msra.mxu0 %v1475
    %1513 = vmatmul.bf16.gmra.mxu0 %v116
    %v1514 = vpop.f32.mrf.mxu0
    %v1515 = vadd.f32 0.0, %v1514
    %v1516 = vpop.f32.mrf.mxu0
    %v1517 = vadd.f32 0.0, %v1516
    %1518 = vdwg.mxu0
    %1519 = vmatpush.bf16.msra.mxu0 0
    %1520 = vmatpush.bf16.msra.mxu0 0
    %1521 = vmatpush.bf16.msra.mxu0 0
    %1522 = vmatpush.bf16.msra.mxu0 0
    %1523 = vmatpush.bf16.msra.mxu0 0
    %1524 = vmatpush.bf16.msra.mxu0 0
    %1525 = vmatpush.bf16.msra.mxu0 0
    %1526 = vmatpush.bf16.msra.mxu0 %v1476
    %1527 = vmatmul.bf16.gmra.mxu0 %v116
    %v1528 = vpop.f32.mrf.mxu0
    %v1529 = vadd.f32 0.0, %v1528
    %v1530 = vpop.f32.mrf.mxu0
    %v1531 = vadd.f32 0.0, %v1530
    %1532 = vdwg.mxu0
    %v1533 = vpack.c.bf16 %v1489, %v1487
    %v1534 = vpack.c.bf16 %v1503, %v1501
    %v1535 = vpack.c.bf16 %v1517, %v1515
    %v1536 = vpack.c.bf16 %v1531, %v1529
    %v1537 = vld [vmem:[#allocation6] sm:$0xff]
    %v1538 = vld [vmem:[#allocation6 + $0x8] sm:$0xff]
    %v1539 = vld [vmem:[#allocation6 + $0x10] sm:$0xff]
    %v1540 = vld [vmem:[#allocation6 + $0x18] sm:$0xff]
    %v1541 = vld [vmem:[#allocation6 + $0x20] sm:$0xff]
    %v1542 = vld [vmem:[#allocation6 + $0x28] sm:$0xff]
    %v1543 = vld [vmem:[#allocation6 + $0x30] sm:$0xff]
    %v1544 = vld [vmem:[#allocation6 + $0x38] sm:$0xff]
    %v1545 = vld [vmem:[#allocation6 + $0x40] sm:$0xff]
    %v1546 = vld [vmem:[#allocation6 + $0x48] sm:$0xff]
    %v1547 = vld [vmem:[#allocation6 + $0x50] sm:$0xff]
    %v1548 = vld [vmem:[#allocation6 + $0x58] sm:$0xff]
    %v1549 = vld [vmem:[#allocation6 + $0x60] sm:$0xff]
    %v1550 = vld [vmem:[#allocation6 + $0x68] sm:$0xff]
    %v1551 = vld [vmem:[#allocation6 + $0x70] sm:$0xff]
    %v1552 = vld [vmem:[#allocation6 + $0x78] sm:$0xff]
    %v1553 = vld [vmem:[#allocation6 + $0x80] sm:$0xff]
    %v1554 = vld [vmem:[#allocation6 + $0x88] sm:$0xff]
    %v1555 = vld [vmem:[#allocation6 + $0x90] sm:$0xff]
    %v1556 = vld [vmem:[#allocation6 + $0x98] sm:$0xff]
    %v1557 = vld [vmem:[#allocation6 + $0xa0] sm:$0xff]
    %v1558 = vld [vmem:[#allocation6 + $0xa8] sm:$0xff]
    %v1559 = vld [vmem:[#allocation6 + $0xb0] sm:$0xff]
    %v1560 = vld [vmem:[#allocation6 + $0xb8] sm:$0xff]
    %v1561 = vld [vmem:[#allocation6 + $0xc0] sm:$0xff]
    %v1562 = vld [vmem:[#allocation6 + $0xc8] sm:$0xff]
    %v1563 = vld [vmem:[#allocation6 + $0xd0] sm:$0xff]
    %v1564 = vld [vmem:[#allocation6 + $0xd8] sm:$0xff]
    %v1565 = vld [vmem:[#allocation6 + $0xe0] sm:$0xff]
    %v1566 = vld [vmem:[#allocation6 + $0xe8] sm:$0xff]
    %v1567 = vld [vmem:[#allocation6 + $0xf0] sm:$0xff]
    %v1568 = vld [vmem:[#allocation6 + $0xf8] sm:$0xff]
    %v1569 = vld [vmem:[#allocation6 + $0x100] sm:$0xff]
    %v1570 = vld [vmem:[#allocation6 + $0x108] sm:$0xff]
    %v1571 = vld [vmem:[#allocation6 + $0x110] sm:$0xff]
    %v1572 = vld [vmem:[#allocation6 + $0x118] sm:$0xff]
    %v1573 = vld [vmem:[#allocation6 + $0x120] sm:$0xff]
    %v1574 = vld [vmem:[#allocation6 + $0x128] sm:$0xff]
    %v1575 = vld [vmem:[#allocation6 + $0x130] sm:$0xff]
    %v1576 = vld [vmem:[#allocation6 + $0x138] sm:$0xff]
    %v1577 = vld [vmem:[#allocation6 + $0x140] sm:$0xff]
    %v1578 = vld [vmem:[#allocation6 + $0x148] sm:$0xff]
    %v1579 = vld [vmem:[#allocation6 + $0x150] sm:$0xff]
    %v1580 = vld [vmem:[#allocation6 + $0x158] sm:$0xff]
    %v1581 = vld [vmem:[#allocation6 + $0x160] sm:$0xff]
    %v1582 = vld [vmem:[#allocation6 + $0x168] sm:$0xff]
    %v1583 = vld [vmem:[#allocation6 + $0x170] sm:$0xff]
    %v1584 = vld [vmem:[#allocation6 + $0x178] sm:$0xff]
    %v1585 = vld [vmem:[#allocation6 + $0x180] sm:$0xff]
    %v1586 = vld [vmem:[#allocation6 + $0x188] sm:$0xff]
    %v1587 = vld [vmem:[#allocation6 + $0x190] sm:$0xff]
    %v1588 = vld [vmem:[#allocation6 + $0x198] sm:$0xff]
    %v1589 = vld [vmem:[#allocation6 + $0x1a0] sm:$0xff]
    %v1590 = vld [vmem:[#allocation6 + $0x1a8] sm:$0xff]
    %v1591 = vld [vmem:[#allocation6 + $0x1b0] sm:$0xff]
    %v1592 = vld [vmem:[#allocation6 + $0x1b8] sm:$0xff]
    %v1593 = vld [vmem:[#allocation6 + $0x1c0] sm:$0xff]
    %v1594 = vld [vmem:[#allocation6 + $0x1c8] sm:$0xff]
    %v1595 = vld [vmem:[#allocation6 + $0x1d0] sm:$0xff]
    %v1596 = vld [vmem:[#allocation6 + $0x1d8] sm:$0xff]
    %v1597 = vld [vmem:[#allocation6 + $0x1e0] sm:$0xff]
    %v1598 = vld [vmem:[#allocation6 + $0x1e8] sm:$0xff]
    %v1599 = vld [vmem:[#allocation6 + $0x1f0] sm:$0xff]
    %v1600 = vld [vmem:[#allocation6 + $0x1f8] sm:$0xff]
    %v1601 = vld [vmem:[#allocation6 + $0x200] sm:$0xff]
    %v1602 = vld [vmem:[#allocation6 + $0x208] sm:$0xff]
    %v1603 = vld [vmem:[#allocation6 + $0x210] sm:$0xff]
    %v1604 = vld [vmem:[#allocation6 + $0x218] sm:$0xff]
    %v1605 = vld [vmem:[#allocation6 + $0x220] sm:$0xff]
    %v1606 = vld [vmem:[#allocation6 + $0x228] sm:$0xff]
    %v1607 = vld [vmem:[#allocation6 + $0x230] sm:$0xff]
    %v1608 = vld [vmem:[#allocation6 + $0x238] sm:$0xff]
    %v1609 = vld [vmem:[#allocation6 + $0x240] sm:$0xff]
    %v1610 = vld [vmem:[#allocation6 + $0x248] sm:$0xff]
    %v1611 = vld [vmem:[#allocation6 + $0x250] sm:$0xff]
    %v1612 = vld [vmem:[#allocation6 + $0x258] sm:$0xff]
    %v1613 = vld [vmem:[#allocation6 + $0x260] sm:$0xff]
    %v1614 = vld [vmem:[#allocation6 + $0x268] sm:$0xff]
    %v1615 = vld [vmem:[#allocation6 + $0x270] sm:$0xff]
    %v1616 = vld [vmem:[#allocation6 + $0x278] sm:$0xff]
    %v1617 = vld [vmem:[#allocation6 + $0x280] sm:$0xff]
    %v1618 = vld [vmem:[#allocation6 + $0x288] sm:$0xff]
    %v1619 = vld [vmem:[#allocation6 + $0x290] sm:$0xff]
    %v1620 = vld [vmem:[#allocation6 + $0x298] sm:$0xff]
    %v1621 = vld [vmem:[#allocation6 + $0x2a0] sm:$0xff]
    %v1622 = vld [vmem:[#allocation6 + $0x2a8] sm:$0xff]
    %v1623 = vld [vmem:[#allocation6 + $0x2b0] sm:$0xff]
    %v1624 = vld [vmem:[#allocation6 + $0x2b8] sm:$0xff]
    %v1625 = vld [vmem:[#allocation6 + $0x2c0] sm:$0xff]
    %v1626 = vld [vmem:[#allocation6 + $0x2c8] sm:$0xff]
    %v1627 = vld [vmem:[#allocation6 + $0x2d0] sm:$0xff]
    %v1628 = vld [vmem:[#allocation6 + $0x2d8] sm:$0xff]
    %v1629 = vld [vmem:[#allocation6 + $0x2e0] sm:$0xff]
    %v1630 = vld [vmem:[#allocation6 + $0x2e8] sm:$0xff]
    %v1631 = vld [vmem:[#allocation6 + $0x2f0] sm:$0xff]
    %v1632 = vld [vmem:[#allocation6 + $0x2f8] sm:$0xff]
    %v1633 = vld [vmem:[#allocation6 + $0x300] sm:$0xff]
    %v1634 = vld [vmem:[#allocation6 + $0x308] sm:$0xff]
    %v1635 = vld [vmem:[#allocation6 + $0x310] sm:$0xff]
    %v1636 = vld [vmem:[#allocation6 + $0x318] sm:$0xff]
    %v1637 = vld [vmem:[#allocation6 + $0x320] sm:$0xff]
    %v1638 = vld [vmem:[#allocation6 + $0x328] sm:$0xff]
    %v1639 = vld [vmem:[#allocation6 + $0x330] sm:$0xff]
    %v1640 = vld [vmem:[#allocation6 + $0x338] sm:$0xff]
    %v1641 = vld [vmem:[#allocation6 + $0x340] sm:$0xff]
    %v1642 = vld [vmem:[#allocation6 + $0x348] sm:$0xff]
    %v1643 = vld [vmem:[#allocation6 + $0x350] sm:$0xff]
    %v1644 = vld [vmem:[#allocation6 + $0x358] sm:$0xff]
    %v1645 = vld [vmem:[#allocation6 + $0x360] sm:$0xff]
    %v1646 = vld [vmem:[#allocation6 + $0x368] sm:$0xff]
    %v1647 = vld [vmem:[#allocation6 + $0x370] sm:$0xff]
    %v1648 = vld [vmem:[#allocation6 + $0x378] sm:$0xff]
    %v1649 = vld [vmem:[#allocation6 + $0x380] sm:$0xff]
    %v1650 = vld [vmem:[#allocation6 + $0x388] sm:$0xff]
    %v1651 = vld [vmem:[#allocation6 + $0x390] sm:$0xff]
    %v1652 = vld [vmem:[#allocation6 + $0x398] sm:$0xff]
    %v1653 = vld [vmem:[#allocation6 + $0x3a0] sm:$0xff]
    %v1654 = vld [vmem:[#allocation6 + $0x3a8] sm:$0xff]
    %v1655 = vld [vmem:[#allocation6 + $0x3b0] sm:$0xff]
    %v1656 = vld [vmem:[#allocation6 + $0x3b8] sm:$0xff]
    %v1657 = vld [vmem:[#allocation6 + $0x3c0] sm:$0xff]
    %v1658 = vld [vmem:[#allocation6 + $0x3c8] sm:$0xff]
    %v1659 = vld [vmem:[#allocation6 + $0x3d0] sm:$0xff]
    %v1660 = vld [vmem:[#allocation6 + $0x3d8] sm:$0xff]
    %v1661 = vld [vmem:[#allocation6 + $0x3e0] sm:$0xff]
    %v1662 = vld [vmem:[#allocation6 + $0x3e8] sm:$0xff]
    %v1663 = vld [vmem:[#allocation6 + $0x3f0] sm:$0xff]
    %v1664 = vld [vmem:[#allocation6 + $0x3f8] sm:$0xff]
    %v1665 = vld [vmem:[%s7] sm:$0xf]
    %v1667 = vperm.slane %v1665, 0
    %v1668 = vperm.slane %v1665, 1
    %v1669 = vperm.slane %v1665, 2
    %v1670 = vperm.slane %v1665, 3
    %v1803 = vunpack.c.l.b16 %v1537
    %v1804 = vunpack.c.h.b16 %v1537
    %v1805 = vunpack.c.l.b16 %v1538
    %v1806 = vunpack.c.h.b16 %v1538
    %v1807 = vunpack.c.l.b16 %v1539
    %v1808 = vunpack.c.h.b16 %v1539
    %v1809 = vunpack.c.l.b16 %v1540
    %v1810 = vunpack.c.h.b16 %v1540
    %v1811 = vunpack.c.l.b16 %v1541
    %v1812 = vunpack.c.h.b16 %v1541
    %v1813 = vunpack.c.l.b16 %v1542
    %v1814 = vunpack.c.h.b16 %v1542
    %v1815 = vunpack.c.l.b16 %v1543
    %v1816 = vunpack.c.h.b16 %v1543
    %v1817 = vunpack.c.l.b16 %v1544
    %v1818 = vunpack.c.h.b16 %v1544
    %v1819 = vunpack.c.l.b16 %v1545
    %v1820 = vunpack.c.h.b16 %v1545
    %v1821 = vunpack.c.l.b16 %v1546
    %v1822 = vunpack.c.h.b16 %v1546
    %v1823 = vunpack.c.l.b16 %v1547
    %v1824 = vunpack.c.h.b16 %v1547
    %v1825 = vunpack.c.l.b16 %v1548
    %v1826 = vunpack.c.h.b16 %v1548
    %v1827 = vunpack.c.l.b16 %v1549
    %v1828 = vunpack.c.h.b16 %v1549
    %v1829 = vunpack.c.l.b16 %v1550
    %v1830 = vunpack.c.h.b16 %v1550
    %v1831 = vunpack.c.l.b16 %v1551
    %v1832 = vunpack.c.h.b16 %v1551
    %v1833 = vunpack.c.l.b16 %v1552
    %v1834 = vunpack.c.h.b16 %v1552
    %v1835 = vunpack.c.l.b16 %v1553
    %v1836 = vunpack.c.h.b16 %v1553
    %v1837 = vunpack.c.l.b16 %v1554
    %v1838 = vunpack.c.h.b16 %v1554
    %v1839 = vunpack.c.l.b16 %v1555
    %v1840 = vunpack.c.h.b16 %v1555
    %v1841 = vunpack.c.l.b16 %v1556
    %v1842 = vunpack.c.h.b16 %v1556
    %v1843 = vunpack.c.l.b16 %v1557
    %v1844 = vunpack.c.h.b16 %v1557
    %v1845 = vunpack.c.l.b16 %v1558
    %v1846 = vunpack.c.h.b16 %v1558
    %v1847 = vunpack.c.l.b16 %v1559
    %v1848 = vunpack.c.h.b16 %v1559
    %v1849 = vunpack.c.l.b16 %v1560
    %v1850 = vunpack.c.h.b16 %v1560
    %v1851 = vunpack.c.l.b16 %v1561
    %v1852 = vunpack.c.h.b16 %v1561
    %v1853 = vunpack.c.l.b16 %v1562
    %v1854 = vunpack.c.h.b16 %v1562
    %v1855 = vunpack.c.l.b16 %v1563
    %v1856 = vunpack.c.h.b16 %v1563
    %v1857 = vunpack.c.l.b16 %v1564
    %v1858 = vunpack.c.h.b16 %v1564
    %v1859 = vunpack.c.l.b16 %v1565
    %v1860 = vunpack.c.h.b16 %v1565
    %v1861 = vunpack.c.l.b16 %v1566
    %v1862 = vunpack.c.h.b16 %v1566
    %v1863 = vunpack.c.l.b16 %v1567
    %v1864 = vunpack.c.h.b16 %v1567
    %v1865 = vunpack.c.l.b16 %v1568
    %v1866 = vunpack.c.h.b16 %v1568
    %v1867 = vunpack.c.l.b16 %v1569
    %v1868 = vunpack.c.h.b16 %v1569
    %v1869 = vunpack.c.l.b16 %v1570
    %v1870 = vunpack.c.h.b16 %v1570
    %v1871 = vunpack.c.l.b16 %v1571
    %v1872 = vunpack.c.h.b16 %v1571
    %v1873 = vunpack.c.l.b16 %v1572
    %v1874 = vunpack.c.h.b16 %v1572
    %v1875 = vunpack.c.l.b16 %v1573
    %v1876 = vunpack.c.h.b16 %v1573
    %v1877 = vunpack.c.l.b16 %v1574
    %v1878 = vunpack.c.h.b16 %v1574
    %v1879 = vunpack.c.l.b16 %v1575
    %v1880 = vunpack.c.h.b16 %v1575
    %v1881 = vunpack.c.l.b16 %v1576
    %v1882 = vunpack.c.h.b16 %v1576
    %v1883 = vunpack.c.l.b16 %v1577
    %v1884 = vunpack.c.h.b16 %v1577
    %v1885 = vunpack.c.l.b16 %v1578
    %v1886 = vunpack.c.h.b16 %v1578
    %v1887 = vunpack.c.l.b16 %v1579
    %v1888 = vunpack.c.h.b16 %v1579
    %v1889 = vunpack.c.l.b16 %v1580
    %v1890 = vunpack.c.h.b16 %v1580
    %v1891 = vunpack.c.l.b16 %v1581
    %v1892 = vunpack.c.h.b16 %v1581
    %v1893 = vunpack.c.l.b16 %v1582
    %v1894 = vunpack.c.h.b16 %v1582
    %v1895 = vunpack.c.l.b16 %v1583
    %v1896 = vunpack.c.h.b16 %v1583
    %v1897 = vunpack.c.l.b16 %v1584
    %v1898 = vunpack.c.h.b16 %v1584
    %v1899 = vunpack.c.l.b16 %v1585
    %v1900 = vunpack.c.h.b16 %v1585
    %v1901 = vunpack.c.l.b16 %v1586
    %v1902 = vunpack.c.h.b16 %v1586
    %v1903 = vunpack.c.l.b16 %v1587
    %v1904 = vunpack.c.h.b16 %v1587
    %v1905 = vunpack.c.l.b16 %v1588
    %v1906 = vunpack.c.h.b16 %v1588
    %v1907 = vunpack.c.l.b16 %v1589
    %v1908 = vunpack.c.h.b16 %v1589
    %v1909 = vunpack.c.l.b16 %v1590
    %v1910 = vunpack.c.h.b16 %v1590
    %v1911 = vunpack.c.l.b16 %v1591
    %v1912 = vunpack.c.h.b16 %v1591
    %v1913 = vunpack.c.l.b16 %v1592
    %v1914 = vunpack.c.h.b16 %v1592
    %v1915 = vunpack.c.l.b16 %v1593
    %v1916 = vunpack.c.h.b16 %v1593
    %v1917 = vunpack.c.l.b16 %v1594
    %v1918 = vunpack.c.h.b16 %v1594
    %v1919 = vunpack.c.l.b16 %v1595
    %v1920 = vunpack.c.h.b16 %v1595
    %v1921 = vunpack.c.l.b16 %v1596
    %v1922 = vunpack.c.h.b16 %v1596
    %v1923 = vunpack.c.l.b16 %v1597
    %v1924 = vunpack.c.h.b16 %v1597
    %v1925 = vunpack.c.l.b16 %v1598
    %v1926 = vunpack.c.h.b16 %v1598
    %v1927 = vunpack.c.l.b16 %v1599
    %v1928 = vunpack.c.h.b16 %v1599
    %v1929 = vunpack.c.l.b16 %v1600
    %v1930 = vunpack.c.h.b16 %v1600
    %v1931 = vunpack.c.l.b16 %v1601
    %v1932 = vunpack.c.h.b16 %v1601
    %v1933 = vunpack.c.l.b16 %v1602
    %v1934 = vunpack.c.h.b16 %v1602
    %v1935 = vunpack.c.l.b16 %v1603
    %v1936 = vunpack.c.h.b16 %v1603
    %v1937 = vunpack.c.l.b16 %v1604
    %v1938 = vunpack.c.h.b16 %v1604
    %v1939 = vunpack.c.l.b16 %v1605
    %v1940 = vunpack.c.h.b16 %v1605
    %v1941 = vunpack.c.l.b16 %v1606
    %v1942 = vunpack.c.h.b16 %v1606
    %v1943 = vunpack.c.l.b16 %v1607
    %v1944 = vunpack.c.h.b16 %v1607
    %v1945 = vunpack.c.l.b16 %v1608
    %v1946 = vunpack.c.h.b16 %v1608
    %v1947 = vunpack.c.l.b16 %v1609
    %v1948 = vunpack.c.h.b16 %v1609
    %v1949 = vunpack.c.l.b16 %v1610
    %v1950 = vunpack.c.h.b16 %v1610
    %v1951 = vunpack.c.l.b16 %v1611
    %v1952 = vunpack.c.h.b16 %v1611
    %v1953 = vunpack.c.l.b16 %v1612
    %v1954 = vunpack.c.h.b16 %v1612
    %v1955 = vunpack.c.l.b16 %v1613
    %v1956 = vunpack.c.h.b16 %v1613
    %v1957 = vunpack.c.l.b16 %v1614
    %v1958 = vunpack.c.h.b16 %v1614
    %v1959 = vunpack.c.l.b16 %v1615
    %v1960 = vunpack.c.h.b16 %v1615
    %v1961 = vunpack.c.l.b16 %v1616
    %v1962 = vunpack.c.h.b16 %v1616
    %v1963 = vunpack.c.l.b16 %v1617
    %v1964 = vunpack.c.h.b16 %v1617
    %v1965 = vunpack.c.l.b16 %v1618
    %v1966 = vunpack.c.h.b16 %v1618
    %v1967 = vunpack.c.l.b16 %v1619
    %v1968 = vunpack.c.h.b16 %v1619
    %v1969 = vunpack.c.l.b16 %v1620
    %v1970 = vunpack.c.h.b16 %v1620
    %v1971 = vunpack.c.l.b16 %v1621
    %v1972 = vunpack.c.h.b16 %v1621
    %v1973 = vunpack.c.l.b16 %v1622
    %v1974 = vunpack.c.h.b16 %v1622
    %v1975 = vunpack.c.l.b16 %v1623
    %v1976 = vunpack.c.h.b16 %v1623
    %v1977 = vunpack.c.l.b16 %v1624
    %v1978 = vunpack.c.h.b16 %v1624
    %v1979 = vunpack.c.l.b16 %v1625
    %v1980 = vunpack.c.h.b16 %v1625
    %v1981 = vunpack.c.l.b16 %v1626
    %v1982 = vunpack.c.h.b16 %v1626
    %v1983 = vunpack.c.l.b16 %v1627
    %v1984 = vunpack.c.h.b16 %v1627
    %v1985 = vunpack.c.l.b16 %v1628
    %v1986 = vunpack.c.h.b16 %v1628
    %v1987 = vunpack.c.l.b16 %v1629
    %v1988 = vunpack.c.h.b16 %v1629
    %v1989 = vunpack.c.l.b16 %v1630
    %v1990 = vunpack.c.h.b16 %v1630
    %v1991 = vunpack.c.l.b16 %v1631
    %v1992 = vunpack.c.h.b16 %v1631
    %v1993 = vunpack.c.l.b16 %v1632
    %v1994 = vunpack.c.h.b16 %v1632
    %v1995 = vunpack.c.l.b16 %v1633
    %v1996 = vunpack.c.h.b16 %v1633
    %v1997 = vunpack.c.l.b16 %v1634
    %v1998 = vunpack.c.h.b16 %v1634
    %v1999 = vunpack.c.l.b16 %v1635
    %v2000 = vunpack.c.h.b16 %v1635
    %v2001 = vunpack.c.l.b16 %v1636
    %v2002 = vunpack.c.h.b16 %v1636
    %v2003 = vunpack.c.l.b16 %v1637
    %v2004 = vunpack.c.h.b16 %v1637
    %v2005 = vunpack.c.l.b16 %v1638
    %v2006 = vunpack.c.h.b16 %v1638
    %v2007 = vunpack.c.l.b16 %v1639
    %v2008 = vunpack.c.h.b16 %v1639
    %v2009 = vunpack.c.l.b16 %v1640
    %v2010 = vunpack.c.h.b16 %v1640
    %v2011 = vunpack.c.l.b16 %v1641
    %v2012 = vunpack.c.h.b16 %v1641
    %v2013 = vunpack.c.l.b16 %v1642
    %v2014 = vunpack.c.h.b16 %v1642
    %v2015 = vunpack.c.l.b16 %v1643
    %v2016 = vunpack.c.h.b16 %v1643
    %v2017 = vunpack.c.l.b16 %v1644
    %v2018 = vunpack.c.h.b16 %v1644
    %v2019 = vunpack.c.l.b16 %v1645
    %v2020 = vunpack.c.h.b16 %v1645
    %v2021 = vunpack.c.l.b16 %v1646
    %v2022 = vunpack.c.h.b16 %v1646
    %v2023 = vunpack.c.l.b16 %v1647
    %v2024 = vunpack.c.h.b16 %v1647
    %v2025 = vunpack.c.l.b16 %v1648
    %v2026 = vunpack.c.h.b16 %v1648
    %v2027 = vunpack.c.l.b16 %v1649
    %v2028 = vunpack.c.h.b16 %v1649
    %v2029 = vunpack.c.l.b16 %v1650
    %v2030 = vunpack.c.h.b16 %v1650
    %v2031 = vunpack.c.l.b16 %v1651
    %v2032 = vunpack.c.h.b16 %v1651
    %v2033 = vunpack.c.l.b16 %v1652
    %v2034 = vunpack.c.h.b16 %v1652
    %v2035 = vunpack.c.l.b16 %v1653
    %v2036 = vunpack.c.h.b16 %v1653
    %v2037 = vunpack.c.l.b16 %v1654
    %v2038 = vunpack.c.h.b16 %v1654
    %v2039 = vunpack.c.l.b16 %v1655
    %v2040 = vunpack.c.h.b16 %v1655
    %v2041 = vunpack.c.l.b16 %v1656
    %v2042 = vunpack.c.h.b16 %v1656
    %v2043 = vunpack.c.l.b16 %v1657
    %v2044 = vunpack.c.h.b16 %v1657
    %v2045 = vunpack.c.l.b16 %v1658
    %v2046 = vunpack.c.h.b16 %v1658
    %v2047 = vunpack.c.l.b16 %v1659
    %v2048 = vunpack.c.h.b16 %v1659
    %v2049 = vunpack.c.l.b16 %v1660
    %v2050 = vunpack.c.h.b16 %v1660
    %v2051 = vunpack.c.l.b16 %v1661
    %v2052 = vunpack.c.h.b16 %v1661
    %v2053 = vunpack.c.l.b16 %v1662
    %v2054 = vunpack.c.h.b16 %v1662
    %v2055 = vunpack.c.l.b16 %v1663
    %v2056 = vunpack.c.h.b16 %v1663
    %v2057 = vunpack.c.l.b16 %v1664
    %v2058 = vunpack.c.h.b16 %v1664
    %v2059 = vpack.c.b16 %v1807, %v1803
    %v2060 = vpack.c.b16 %v1808, %v1804
    %v2061 = vpack.c.b16 %v1809, %v1805
    %v2062 = vpack.c.b16 %v1810, %v1806
    %v2063 = vpack.c.b16 %v1815, %v1811
    %v2064 = vpack.c.b16 %v1816, %v1812
    %v2065 = vpack.c.b16 %v1817, %v1813
    %v2066 = vpack.c.b16 %v1818, %v1814
    %v2067 = vpack.c.b16 %v1823, %v1819
    %v2068 = vpack.c.b16 %v1824, %v1820
    %v2069 = vpack.c.b16 %v1825, %v1821
    %v2070 = vpack.c.b16 %v1826, %v1822
    %v2071 = vpack.c.b16 %v1831, %v1827
    %v2072 = vpack.c.b16 %v1832, %v1828
    %v2073 = vpack.c.b16 %v1833, %v1829
    %v2074 = vpack.c.b16 %v1834, %v1830
    %v2075 = vpack.c.b16 %v1839, %v1835
    %v2076 = vpack.c.b16 %v1840, %v1836
    %v2077 = vpack.c.b16 %v1841, %v1837
    %v2078 = vpack.c.b16 %v1842, %v1838
    %v2079 = vpack.c.b16 %v1847, %v1843
    %v2080 = vpack.c.b16 %v1848, %v1844
    %v2081 = vpack.c.b16 %v1849, %v1845
    %v2082 = vpack.c.b16 %v1850, %v1846
    %v2083 = vpack.c.b16 %v1855, %v1851
    %v2084 = vpack.c.b16 %v1856, %v1852
    %v2085 = vpack.c.b16 %v1857, %v1853
    %v2086 = vpack.c.b16 %v1858, %v1854
    %v2087 = vpack.c.b16 %v1863, %v1859
    %v2088 = vpack.c.b16 %v1864, %v1860
    %v2089 = vpack.c.b16 %v1865, %v1861
    %v2090 = vpack.c.b16 %v1866, %v1862
    %v2091 = vpack.c.b16 %v1871, %v1867
    %v2092 = vpack.c.b16 %v1872, %v1868
    %v2093 = vpack.c.b16 %v1873, %v1869
    %v2094 = vpack.c.b16 %v1874, %v1870
    %v2095 = vpack.c.b16 %v1879, %v1875
    %v2096 = vpack.c.b16 %v1880, %v1876
    %v2097 = vpack.c.b16 %v1881, %v1877
    %v2098 = vpack.c.b16 %v1882, %v1878
    %v2099 = vpack.c.b16 %v1887, %v1883
    %v2100 = vpack.c.b16 %v1888, %v1884
    %v2101 = vpack.c.b16 %v1889, %v1885
    %v2102 = vpack.c.b16 %v1890, %v1886
    %v2103 = vpack.c.b16 %v1895, %v1891
    %v2104 = vpack.c.b16 %v1896, %v1892
    %v2105 = vpack.c.b16 %v1897, %v1893
    %v2106 = vpack.c.b16 %v1898, %v1894
    %v2107 = vpack.c.b16 %v1903, %v1899
    %v2108 = vpack.c.b16 %v1904, %v1900
    %v2109 = vpack.c.b16 %v1905, %v1901
    %v2110 = vpack.c.b16 %v1906, %v1902
    %v2111 = vpack.c.b16 %v1911, %v1907
    %v2112 = vpack.c.b16 %v1912, %v1908
    %v2113 = vpack.c.b16 %v1913, %v1909
    %v2114 = vpack.c.b16 %v1914, %v1910
    %v2115 = vpack.c.b16 %v1919, %v1915
    %v2116 = vpack.c.b16 %v1920, %v1916
    %v2117 = vpack.c.b16 %v1921, %v1917
    %v2118 = vpack.c.b16 %v1922, %v1918
    %v2119 = vpack.c.b16 %v1927, %v1923
    %v2120 = vpack.c.b16 %v1928, %v1924
    %v2121 = vpack.c.b16 %v1929, %v1925
    %v2122 = vpack.c.b16 %v1930, %v1926
    %v2123 = vpack.c.b16 %v1935, %v1931
    %v2124 = vpack.c.b16 %v1936, %v1932
    %v2125 = vpack.c.b16 %v1937, %v1933
    %v2126 = vpack.c.b16 %v1938, %v1934
    %v2127 = vpack.c.b16 %v1943, %v1939
    %v2128 = vpack.c.b16 %v1944, %v1940
    %v2129 = vpack.c.b16 %v1945, %v1941
    %v2130 = vpack.c.b16 %v1946, %v1942
    %v2131 = vpack.c.b16 %v1951, %v1947
    %v2132 = vpack.c.b16 %v1952, %v1948
    %v2133 = vpack.c.b16 %v1953, %v1949
    %v2134 = vpack.c.b16 %v1954, %v1950
    %v2135 = vpack.c.b16 %v1959, %v1955
    %v2136 = vpack.c.b16 %v1960, %v1956
    %v2137 = vpack.c.b16 %v1961, %v1957
    %v2138 = vpack.c.b16 %v1962, %v1958
    %v2139 = vpack.c.b16 %v1967, %v1963
    %v2140 = vpack.c.b16 %v1968, %v1964
    %v2141 = vpack.c.b16 %v1969, %v1965
    %v2142 = vpack.c.b16 %v1970, %v1966
    %v2143 = vpack.c.b16 %v1975, %v1971
    %v2144 = vpack.c.b16 %v1976, %v1972
    %v2145 = vpack.c.b16 %v1977, %v1973
    %v2146 = vpack.c.b16 %v1978, %v1974
    %v2147 = vpack.c.b16 %v1983, %v1979
    %v2148 = vpack.c.b16 %v1984, %v1980
    %v2149 = vpack.c.b16 %v1985, %v1981
    %v2150 = vpack.c.b16 %v1986, %v1982
    %v2151 = vpack.c.b16 %v1991, %v1987
    %v2152 = vpack.c.b16 %v1992, %v1988
    %v2153 = vpack.c.b16 %v1993, %v1989
    %v2154 = vpack.c.b16 %v1994, %v1990
    %v2155 = vpack.c.b16 %v1999, %v1995
    %v2156 = vpack.c.b16 %v2000, %v1996
    %v2157 = vpack.c.b16 %v2001, %v1997
    %v2158 = vpack.c.b16 %v2002, %v1998
    %v2159 = vpack.c.b16 %v2007, %v2003
    %v2160 = vpack.c.b16 %v2008, %v2004
    %v2161 = vpack.c.b16 %v2009, %v2005
    %v2162 = vpack.c.b16 %v2010, %v2006
    %v2163 = vpack.c.b16 %v2015, %v2011
    %v2164 = vpack.c.b16 %v2016, %v2012
    %v2165 = vpack.c.b16 %v2017, %v2013
    %v2166 = vpack.c.b16 %v2018, %v2014
    %v2167 = vpack.c.b16 %v2023, %v2019
    %v2168 = vpack.c.b16 %v2024, %v2020
    %v2169 = vpack.c.b16 %v2025, %v2021
    %v2170 = vpack.c.b16 %v2026, %v2022
    %v2171 = vpack.c.b16 %v2031, %v2027
    %v2172 = vpack.c.b16 %v2032, %v2028
    %v2173 = vpack.c.b16 %v2033, %v2029
    %v2174 = vpack.c.b16 %v2034, %v2030
    %v2175 = vpack.c.b16 %v2039, %v2035
    %v2176 = vpack.c.b16 %v2040, %v2036
    %v2177 = vpack.c.b16 %v2041, %v2037
    %v2178 = vpack.c.b16 %v2042, %v2038
    %v2179 = vpack.c.b16 %v2047, %v2043
    %v2180 = vpack.c.b16 %v2048, %v2044
    %v2181 = vpack.c.b16 %v2049, %v2045
    %v2182 = vpack.c.b16 %v2050, %v2046
    %v2183 = vpack.c.b16 %v2055, %v2051
    %v2184 = vpack.c.b16 %v2056, %v2052
    %v2185 = vpack.c.b16 %v2057, %v2053
    %v2186 = vpack.c.b16 %v2058, %v2054
    %2315 = vmatpush.bf16.msra.mxu0 %v2087
    %2316 = vmatpush.bf16.msra.mxu0 %v2083
    %2317 = vmatpush.bf16.msra.mxu0 %v2079
    %2318 = vmatpush.bf16.msra.mxu0 %v2075
    %2319 = vmatpush.bf16.msra.mxu0 %v2071
    %2320 = vmatpush.bf16.msra.mxu0 %v2067
    %2321 = vmatpush.bf16.msra.mxu0 %v2063
    %2322 = vmatpush.bf16.msra.mxu0 %v2059
    %2323 = vmatmul.bf16.gmra.mxu0 %v1533
    %v2324 = vpop.f32.mrf.mxu0
    %v2325 = vadd.f32 %v1667, %v2324
    %v2326 = vpop.f32.mrf.mxu0
    %v2327 = vadd.f32 %v1667, %v2326
    %2328 = vdwg.mxu0
    %2329 = vmatpush.bf16.msra.mxu0 %v2119
    %2330 = vmatpush.bf16.msra.mxu0 %v2115
    %2331 = vmatpush.bf16.msra.mxu0 %v2111
    %2332 = vmatpush.bf16.msra.mxu0 %v2107
    %2333 = vmatpush.bf16.msra.mxu0 %v2103
    %2334 = vmatpush.bf16.msra.mxu0 %v2099
    %2335 = vmatpush.bf16.msra.mxu0 %v2095
    %2336 = vmatpush.bf16.msra.mxu0 %v2091
    %2337 = vmatmul.bf16.gmra.mxu0 %v1534
    %v2338 = vpop.f32.mrf.mxu0
    %v2339 = vadd.f32 %v2325, %v2338
    %v2340 = vpop.f32.mrf.mxu0
    %v2341 = vadd.f32 %v2327, %v2340
    %2342 = vdwg.mxu0
    %2343 = vmatpush.bf16.msra.mxu0 %v2151
    %2344 = vmatpush.bf16.msra.mxu0 %v2147
    %2345 = vmatpush.bf16.msra.mxu0 %v2143
    %2346 = vmatpush.bf16.msra.mxu0 %v2139
    %2347 = vmatpush.bf16.msra.mxu0 %v2135
    %2348 = vmatpush.bf16.msra.mxu0 %v2131
    %2349 = vmatpush.bf16.msra.mxu0 %v2127
    %2350 = vmatpush.bf16.msra.mxu0 %v2123
    %2351 = vmatmul.bf16.gmra.mxu0 %v1535
    %v2352 = vpop.f32.mrf.mxu0
    %v2353 = vadd.f32 %v2339, %v2352
    %v2354 = vpop.f32.mrf.mxu0
    %v2355 = vadd.f32 %v2341, %v2354
    %2356 = vdwg.mxu0
    %2357 = vmatpush.bf16.msra.mxu0 %v2183
    %2358 = vmatpush.bf16.msra.mxu0 %v2179
    %2359 = vmatpush.bf16.msra.mxu0 %v2175
    %2360 = vmatpush.bf16.msra.mxu0 %v2171
    %2361 = vmatpush.bf16.msra.mxu0 %v2167
    %2362 = vmatpush.bf16.msra.mxu0 %v2163
    %2363 = vmatpush.bf16.msra.mxu0 %v2159
    %2364 = vmatpush.bf16.msra.mxu0 %v2155
    %2365 = vmatmul.bf16.gmra.mxu0 %v1536
    %v2366 = vpop.f32.mrf.mxu0
    %v2367 = vadd.f32 %v2353, %v2366
    %v2368 = vpop.f32.mrf.mxu0
    %v2369 = vadd.f32 %v2355, %v2368
    %2370 = vdwg.mxu0
    %2371 = vmatpush.bf16.msra.mxu0 %v2088
    %2372 = vmatpush.bf16.msra.mxu0 %v2084
    %2373 = vmatpush.bf16.msra.mxu0 %v2080
    %2374 = vmatpush.bf16.msra.mxu0 %v2076
    %2375 = vmatpush.bf16.msra.mxu0 %v2072
    %2376 = vmatpush.bf16.msra.mxu0 %v2068
    %2377 = vmatpush.bf16.msra.mxu0 %v2064
    %2378 = vmatpush.bf16.msra.mxu0 %v2060
    %2379 = vmatmul.bf16.gmra.mxu0 %v1533
    %v2380 = vpop.f32.mrf.mxu0
    %v2381 = vadd.f32 %v1668, %v2380
    %v2382 = vpop.f32.mrf.mxu0
    %v2383 = vadd.f32 %v1668, %v2382
    %2384 = vdwg.mxu0
    %2385 = vmatpush.bf16.msra.mxu0 %v2120
    %2386 = vmatpush.bf16.msra.mxu0 %v2116
    %2387 = vmatpush.bf16.msra.mxu0 %v2112
    %2388 = vmatpush.bf16.msra.mxu0 %v2108
    %2389 = vmatpush.bf16.msra.mxu0 %v2104
    %2390 = vmatpush.bf16.msra.mxu0 %v2100
    %2391 = vmatpush.bf16.msra.mxu0 %v2096
    %2392 = vmatpush.bf16.msra.mxu0 %v2092
    %2393 = vmatmul.bf16.gmra.mxu0 %v1534
    %v2394 = vpop.f32.mrf.mxu0
    %v2395 = vadd.f32 %v2381, %v2394
    %v2396 = vpop.f32.mrf.mxu0
    %v2397 = vadd.f32 %v2383, %v2396
    %2398 = vdwg.mxu0
    %2399 = vmatpush.bf16.msra.mxu0 %v2152
    %2400 = vmatpush.bf16.msra.mxu0 %v2148
    %2401 = vmatpush.bf16.msra.mxu0 %v2144
    %2402 = vmatpush.bf16.msra.mxu0 %v2140
    %2403 = vmatpush.bf16.msra.mxu0 %v2136
    %2404 = vmatpush.bf16.msra.mxu0 %v2132
    %2405 = vmatpush.bf16.msra.mxu0 %v2128
    %2406 = vmatpush.bf16.msra.mxu0 %v2124
    %2407 = vmatmul.bf16.gmra.mxu0 %v1535
    %v2408 = vpop.f32.mrf.mxu0
    %v2409 = vadd.f32 %v2395, %v2408
    %v2410 = vpop.f32.mrf.mxu0
    %v2411 = vadd.f32 %v2397, %v2410
    %2412 = vdwg.mxu0
    %2413 = vmatpush.bf16.msra.mxu0 %v2184
    %2414 = vmatpush.bf16.msra.mxu0 %v2180
    %2415 = vmatpush.bf16.msra.mxu0 %v2176
    %2416 = vmatpush.bf16.msra.mxu0 %v2172
    %2417 = vmatpush.bf16.msra.mxu0 %v2168
    %2418 = vmatpush.bf16.msra.mxu0 %v2164
    %2419 = vmatpush.bf16.msra.mxu0 %v2160
    %2420 = vmatpush.bf16.msra.mxu0 %v2156
    %2421 = vmatmul.bf16.gmra.mxu0 %v1536
    %v2422 = vpop.f32.mrf.mxu0
    %v2423 = vadd.f32 %v2409, %v2422
    %v2424 = vpop.f32.mrf.mxu0
    %v2425 = vadd.f32 %v2411, %v2424
    %2426 = vdwg.mxu0
    %2427 = vmatpush.bf16.msra.mxu0 %v2089
    %2428 = vmatpush.bf16.msra.mxu0 %v2085
    %2429 = vmatpush.bf16.msra.mxu0 %v2081
    %2430 = vmatpush.bf16.msra.mxu0 %v2077
    %2431 = vmatpush.bf16.msra.mxu0 %v2073
    %2432 = vmatpush.bf16.msra.mxu0 %v2069
    %2433 = vmatpush.bf16.msra.mxu0 %v2065
    %2434 = vmatpush.bf16.msra.mxu0 %v2061
    %2435 = vmatmul.bf16.gmra.mxu0 %v1533
    %v2436 = vpop.f32.mrf.mxu0
    %v2437 = vadd.f32 %v1669, %v2436
    %v2438 = vpop.f32.mrf.mxu0
    %v2439 = vadd.f32 %v1669, %v2438
    %2440 = vdwg.mxu0
    %2441 = vmatpush.bf16.msra.mxu0 %v2121
    %2442 = vmatpush.bf16.msra.mxu0 %v2117
    %2443 = vmatpush.bf16.msra.mxu0 %v2113
    %2444 = vmatpush.bf16.msra.mxu0 %v2109
    %2445 = vmatpush.bf16.msra.mxu0 %v2105
    %2446 = vmatpush.bf16.msra.mxu0 %v2101
    %2447 = vmatpush.bf16.msra.mxu0 %v2097
    %2448 = vmatpush.bf16.msra.mxu0 %v2093
    %2449 = vmatmul.bf16.gmra.mxu0 %v1534
    %v2450 = vpop.f32.mrf.mxu0
    %v2451 = vadd.f32 %v2437, %v2450
    %v2452 = vpop.f32.mrf.mxu0
    %v2453 = vadd.f32 %v2439, %v2452
    %2454 = vdwg.mxu0
    %2455 = vmatpush.bf16.msra.mxu0 %v2153
    %2456 = vmatpush.bf16.msra.mxu0 %v2149
    %2457 = vmatpush.bf16.msra.mxu0 %v2145
    %2458 = vmatpush.bf16.msra.mxu0 %v2141
    %2459 = vmatpush.bf16.msra.mxu0 %v2137
    %2460 = vmatpush.bf16.msra.mxu0 %v2133
    %2461 = vmatpush.bf16.msra.mxu0 %v2129
    %2462 = vmatpush.bf16.msra.mxu0 %v2125
    %2463 = vmatmul.bf16.gmra.mxu0 %v1535
    %v2464 = vpop.f32.mrf.mxu0
    %v2465 = vadd.f32 %v2451, %v2464
    %v2466 = vpop.f32.mrf.mxu0
    %v2467 = vadd.f32 %v2453, %v2466
    %2468 = vdwg.mxu0
    %2469 = vmatpush.bf16.msra.mxu0 %v2185
    %2470 = vmatpush.bf16.msra.mxu0 %v2181
    %2471 = vmatpush.bf16.msra.mxu0 %v2177
    %2472 = vmatpush.bf16.msra.mxu0 %v2173
    %2473 = vmatpush.bf16.msra.mxu0 %v2169
    %2474 = vmatpush.bf16.msra.mxu0 %v2165
    %2475 = vmatpush.bf16.msra.mxu0 %v2161
    %2476 = vmatpush.bf16.msra.mxu0 %v2157
    %2477 = vmatmul.bf16.gmra.mxu0 %v1536
    %v2478 = vpop.f32.mrf.mxu0
    %v2479 = vadd.f32 %v2465, %v2478
    %v2480 = vpop.f32.mrf.mxu0
    %v2481 = vadd.f32 %v2467, %v2480
    %2482 = vdwg.mxu0
    %2483 = vmatpush.bf16.msra.mxu0 %v2090
    %2484 = vmatpush.bf16.msra.mxu0 %v2086
    %2485 = vmatpush.bf16.msra.mxu0 %v2082
    %2486 = vmatpush.bf16.msra.mxu0 %v2078
    %2487 = vmatpush.bf16.msra.mxu0 %v2074
    %2488 = vmatpush.bf16.msra.mxu0 %v2070
    %2489 = vmatpush.bf16.msra.mxu0 %v2066
    %2490 = vmatpush.bf16.msra.mxu0 %v2062
    %2491 = vmatmul.bf16.gmra.mxu0 %v1533
    %v2492 = vpop.f32.mrf.mxu0
    %v2493 = vadd.f32 %v1670, %v2492
    %v2494 = vpop.f32.mrf.mxu0
    %v2495 = vadd.f32 %v1670, %v2494
    %2496 = vdwg.mxu0
    %2497 = vmatpush.bf16.msra.mxu0 %v2122
    %2498 = vmatpush.bf16.msra.mxu0 %v2118
    %2499 = vmatpush.bf16.msra.mxu0 %v2114
    %2500 = vmatpush.bf16.msra.mxu0 %v2110
    %2501 = vmatpush.bf16.msra.mxu0 %v2106
    %2502 = vmatpush.bf16.msra.mxu0 %v2102
    %2503 = vmatpush.bf16.msra.mxu0 %v2098
    %2504 = vmatpush.bf16.msra.mxu0 %v2094
    %2505 = vmatmul.bf16.gmra.mxu0 %v1534
    %v2506 = vpop.f32.mrf.mxu0
    %v2507 = vadd.f32 %v2493, %v2506
    %v2508 = vpop.f32.mrf.mxu0
    %v2509 = vadd.f32 %v2495, %v2508
    %2510 = vdwg.mxu0
    %2511 = vmatpush.bf16.msra.mxu0 %v2154
    %2512 = vmatpush.bf16.msra.mxu0 %v2150
    %2513 = vmatpush.bf16.msra.mxu0 %v2146
    %2514 = vmatpush.bf16.msra.mxu0 %v2142
    %2515 = vmatpush.bf16.msra.mxu0 %v2138
    %2516 = vmatpush.bf16.msra.mxu0 %v2134
    %2517 = vmatpush.bf16.msra.mxu0 %v2130
    %2518 = vmatpush.bf16.msra.mxu0 %v2126
    %2519 = vmatmul.bf16.gmra.mxu0 %v1535
    %v2520 = vpop.f32.mrf.mxu0
    %v2521 = vadd.f32 %v2507, %v2520
    %v2522 = vpop.f32.mrf.mxu0
    %v2523 = vadd.f32 %v2509, %v2522
    %2524 = vdwg.mxu0
    %2525 = vmatpush.bf16.msra.mxu0 %v2186
    %2526 = vmatpush.bf16.msra.mxu0 %v2182
    %2527 = vmatpush.bf16.msra.mxu0 %v2178
    %2528 = vmatpush.bf16.msra.mxu0 %v2174
    %2529 = vmatpush.bf16.msra.mxu0 %v2170
    %2530 = vmatpush.bf16.msra.mxu0 %v2166
    %2531 = vmatpush.bf16.msra.mxu0 %v2162
    %2532 = vmatpush.bf16.msra.mxu0 %v2158
    %2533 = vmatmul.bf16.gmra.mxu0 %v1536
    %v2534 = vpop.f32.mrf.mxu0
    %v2535 = vadd.f32 %v2521, %v2534
    %v2536 = vpop.f32.mrf.mxu0
    %v2537 = vadd.f32 %v2523, %v2536
    %2538 = vdwg.mxu0
    %v2539 = vmax.f32 %v2367, 0.0
    %v2540 = vmax.f32 %v2423, 0.0
    %v2541 = vmax.f32 %v2479, 0.0
    %v2542 = vmax.f32 %v2535, 0.0
    %v2543 = vmax.f32 %v2369, 0.0
    %v2544 = vmax.f32 %v2425, 0.0
    %v2545 = vmax.f32 %v2481, 0.0
    %v2546 = vmax.f32 %v2537, 0.0
    %v2547 = vpack.c.bf16 %v2543, %v2539
    %v2548 = vpack.c.bf16 %v2544, %v2540
    %v2549 = vpack.c.bf16 %v2545, %v2541
    %v2550 = vpack.c.bf16 %v2546, %v2542
    %2551 = vmatpush.bf16.msra.mxu0 0
    %2552 = vmatpush.bf16.msra.mxu0 0
    %2553 = vmatpush.bf16.msra.mxu0 0
    %2554 = vmatpush.bf16.msra.mxu0 0
    %2555 = vmatpush.bf16.msra.mxu0 0
    %2556 = vmatpush.bf16.msra.mxu0 0
    %2557 = vmatpush.bf16.msra.mxu0 0
    %2558 = vmatpush.bf16.msra.mxu0 %v2547
    %2559 = vmatmul.bf16.gmra.mxu0 %v116
    %v2560 = vpop.f32.mrf.mxu0
    %v2561 = vadd.f32 0.0, %v2560
    %v2562 = vpop.f32.mrf.mxu0
    %v2563 = vadd.f32 0.0, %v2562
    %2564 = vdwg.mxu0
    %2565 = vmatpush.bf16.msra.mxu0 0
    %2566 = vmatpush.bf16.msra.mxu0 0
    %2567 = vmatpush.bf16.msra.mxu0 0
    %2568 = vmatpush.bf16.msra.mxu0 0
    %2569 = vmatpush.bf16.msra.mxu0 0
    %2570 = vmatpush.bf16.msra.mxu0 0
    %2571 = vmatpush.bf16.msra.mxu0 0
    %2572 = vmatpush.bf16.msra.mxu0 %v2548
    %2573 = vmatmul.bf16.gmra.mxu0 %v116
    %v2574 = vpop.f32.mrf.mxu0
    %v2575 = vadd.f32 0.0, %v2574
    %v2576 = vpop.f32.mrf.mxu0
    %v2577 = vadd.f32 0.0, %v2576
    %2578 = vdwg.mxu0
    %2579 = vmatpush.bf16.msra.mxu0 0
    %2580 = vmatpush.bf16.msra.mxu0 0
    %2581 = vmatpush.bf16.msra.mxu0 0
    %2582 = vmatpush.bf16.msra.mxu0 0
    %2583 = vmatpush.bf16.msra.mxu0 0
    %2584 = vmatpush.bf16.msra.mxu0 0
    %2585 = vmatpush.bf16.msra.mxu0 0
    %2586 = vmatpush.bf16.msra.mxu0 %v2549
    %2587 = vmatmul.bf16.gmra.mxu0 %v116
    %v2588 = vpop.f32.mrf.mxu0
    %v2589 = vadd.f32 0.0, %v2588
    %v2590 = vpop.f32.mrf.mxu0
    %v2591 = vadd.f32 0.0, %v2590
    %2592 = vdwg.mxu0
    %2593 = vmatpush.bf16.msra.mxu0 0
    %2594 = vmatpush.bf16.msra.mxu0 0
    %2595 = vmatpush.bf16.msra.mxu0 0
    %2596 = vmatpush.bf16.msra.mxu0 0
    %2597 = vmatpush.bf16.msra.mxu0 0
    %2598 = vmatpush.bf16.msra.mxu0 0
    %2599 = vmatpush.bf16.msra.mxu0 0
    %2600 = vmatpush.bf16.msra.mxu0 %v2550
    %2601 = vmatmul.bf16.gmra.mxu0 %v116
    %v2602 = vpop.f32.mrf.mxu0
    %v2603 = vadd.f32 0.0, %v2602
    %v2604 = vpop.f32.mrf.mxu0
    %v2605 = vadd.f32 0.0, %v2604
    %2606 = vdwg.mxu0
    %v2607 = vpack.c.bf16 %v2563, %v2561
    %v2608 = vpack.c.bf16 %v2577, %v2575
    %v2609 = vpack.c.bf16 %v2591, %v2589
    %v2610 = vpack.c.bf16 %v2605, %v2603
    %v2611 = vld [vmem:[#allocation7] sm:$0xf]
    %v2612 = vld [vmem:[#allocation7 + $0x4] sm:$0xf]
    %v2613 = vld [vmem:[#allocation7 + $0x8] sm:$0xf]
    %v2614 = vld [vmem:[#allocation7 + $0xc] sm:$0xf]
    %v2615 = vld [vmem:[#allocation7 + $0x10] sm:$0xf]
    %v2616 = vld [vmem:[#allocation7 + $0x14] sm:$0xf]
    %v2617 = vld [vmem:[#allocation7 + $0x18] sm:$0xf]
    %v2618 = vld [vmem:[#allocation7 + $0x1c] sm:$0xf]
    %v2619 = vld [vmem:[#allocation7 + $0x20] sm:$0xf]
    %v2620 = vld [vmem:[#allocation7 + $0x24] sm:$0xf]
    %v2621 = vld [vmem:[#allocation7 + $0x28] sm:$0xf]
    %v2622 = vld [vmem:[#allocation7 + $0x2c] sm:$0xf]
    %v2623 = vld [vmem:[#allocation7 + $0x30] sm:$0xf]
    %v2624 = vld [vmem:[#allocation7 + $0x34] sm:$0xf]
    %v2625 = vld [vmem:[#allocation7 + $0x38] sm:$0xf]
    %v2626 = vld [vmem:[#allocation7 + $0x3c] sm:$0xf]
    %v2627 = vld [vmem:[#allocation7 + $0x40] sm:$0xf]
    %v2628 = vld [vmem:[#allocation7 + $0x44] sm:$0xf]
    %v2629 = vld [vmem:[#allocation7 + $0x48] sm:$0xf]
    %v2630 = vld [vmem:[#allocation7 + $0x4c] sm:$0xf]
    %v2631 = vld [vmem:[#allocation7 + $0x50] sm:$0xf]
    %v2632 = vld [vmem:[#allocation7 + $0x54] sm:$0xf]
    %v2633 = vld [vmem:[#allocation7 + $0x58] sm:$0xf]
    %v2634 = vld [vmem:[#allocation7 + $0x5c] sm:$0xf]
    %v2635 = vld [vmem:[#allocation7 + $0x60] sm:$0xf]
    %v2636 = vld [vmem:[#allocation7 + $0x64] sm:$0xf]
    %v2637 = vld [vmem:[#allocation7 + $0x68] sm:$0xf]
    %v2638 = vld [vmem:[#allocation7 + $0x6c] sm:$0xf]
    %v2639 = vld [vmem:[#allocation7 + $0x70] sm:$0xf]
    %v2640 = vld [vmem:[#allocation7 + $0x74] sm:$0xf]
    %v2641 = vld [vmem:[#allocation7 + $0x78] sm:$0xf]
    %v2642 = vld [vmem:[#allocation7 + $0x7c] sm:$0xf]
    %v2643 = vld [vmem:[#allocation7 + $0x80] sm:$0xf]
    %v2644 = vld [vmem:[#allocation7 + $0x84] sm:$0xf]
    %v2645 = vld [vmem:[#allocation7 + $0x88] sm:$0xf]
    %v2646 = vld [vmem:[#allocation7 + $0x8c] sm:$0xf]
    %v2647 = vld [vmem:[#allocation7 + $0x90] sm:$0xf]
    %v2648 = vld [vmem:[#allocation7 + $0x94] sm:$0xf]
    %v2649 = vld [vmem:[#allocation7 + $0x98] sm:$0xf]
    %v2650 = vld [vmem:[#allocation7 + $0x9c] sm:$0xf]
    %v2651 = vld [vmem:[#allocation7 + $0xa0] sm:$0xf]
    %v2652 = vld [vmem:[#allocation7 + $0xa4] sm:$0xf]
    %v2653 = vld [vmem:[#allocation7 + $0xa8] sm:$0xf]
    %v2654 = vld [vmem:[#allocation7 + $0xac] sm:$0xf]
    %v2655 = vld [vmem:[#allocation7 + $0xb0] sm:$0xf]
    %v2656 = vld [vmem:[#allocation7 + $0xb4] sm:$0xf]
    %v2657 = vld [vmem:[#allocation7 + $0xb8] sm:$0xf]
    %v2658 = vld [vmem:[#allocation7 + $0xbc] sm:$0xf]
    %v2659 = vld [vmem:[#allocation7 + $0xc0] sm:$0xf]
    %v2660 = vld [vmem:[#allocation7 + $0xc4] sm:$0xf]
    %v2661 = vld [vmem:[#allocation7 + $0xc8] sm:$0xf]
    %v2662 = vld [vmem:[#allocation7 + $0xcc] sm:$0xf]
    %v2663 = vld [vmem:[#allocation7 + $0xd0] sm:$0xf]
    %v2664 = vld [vmem:[#allocation7 + $0xd4] sm:$0xf]
    %v2665 = vld [vmem:[#allocation7 + $0xd8] sm:$0xf]
    %v2666 = vld [vmem:[#allocation7 + $0xdc] sm:$0xf]
    %v2667 = vld [vmem:[#allocation7 + $0xe0] sm:$0xf]
    %v2668 = vld [vmem:[#allocation7 + $0xe4] sm:$0xf]
    %v2669 = vld [vmem:[#allocation7 + $0xe8] sm:$0xf]
    %v2670 = vld [vmem:[#allocation7 + $0xec] sm:$0xf]
    %v2671 = vld [vmem:[#allocation7 + $0xf0] sm:$0xf]
    %v2672 = vld [vmem:[#allocation7 + $0xf4] sm:$0xf]
    %v2673 = vld [vmem:[#allocation7 + $0xf8] sm:$0xf]
    %v2674 = vld [vmem:[#allocation7 + $0xfc] sm:$0xf]
    %v2675 = vld [vmem:[%s9] sm:$0x1]
    %v2677 = vperm.slane %v2675, 0
    %v2743 = vunpack.c.l.b16 %v2611
    %v2744 = vunpack.c.l.b16 %v2612
    %v2745 = vunpack.c.l.b16 %v2613
    %v2746 = vunpack.c.l.b16 %v2614
    %v2747 = vunpack.c.l.b16 %v2615
    %v2748 = vunpack.c.l.b16 %v2616
    %v2749 = vunpack.c.l.b16 %v2617
    %v2750 = vunpack.c.l.b16 %v2618
    %v2751 = vunpack.c.l.b16 %v2619
    %v2752 = vunpack.c.l.b16 %v2620
    %v2753 = vunpack.c.l.b16 %v2621
    %v2754 = vunpack.c.l.b16 %v2622
    %v2755 = vunpack.c.l.b16 %v2623
    %v2756 = vunpack.c.l.b16 %v2624
    %v2757 = vunpack.c.l.b16 %v2625
    %v2758 = vunpack.c.l.b16 %v2626
    %v2759 = vunpack.c.l.b16 %v2627
    %v2760 = vunpack.c.l.b16 %v2628
    %v2761 = vunpack.c.l.b16 %v2629
    %v2762 = vunpack.c.l.b16 %v2630
    %v2763 = vunpack.c.l.b16 %v2631
    %v2764 = vunpack.c.l.b16 %v2632
    %v2765 = vunpack.c.l.b16 %v2633
    %v2766 = vunpack.c.l.b16 %v2634
    %v2767 = vunpack.c.l.b16 %v2635
    %v2768 = vunpack.c.l.b16 %v2636
    %v2769 = vunpack.c.l.b16 %v2637
    %v2770 = vunpack.c.l.b16 %v2638
    %v2771 = vunpack.c.l.b16 %v2639
    %v2772 = vunpack.c.l.b16 %v2640
    %v2773 = vunpack.c.l.b16 %v2641
    %v2774 = vunpack.c.l.b16 %v2642
    %v2775 = vunpack.c.l.b16 %v2643
    %v2776 = vunpack.c.l.b16 %v2644
    %v2777 = vunpack.c.l.b16 %v2645
    %v2778 = vunpack.c.l.b16 %v2646
    %v2779 = vunpack.c.l.b16 %v2647
    %v2780 = vunpack.c.l.b16 %v2648
    %v2781 = vunpack.c.l.b16 %v2649
    %v2782 = vunpack.c.l.b16 %v2650
    %v2783 = vunpack.c.l.b16 %v2651
    %v2784 = vunpack.c.l.b16 %v2652
    %v2785 = vunpack.c.l.b16 %v2653
    %v2786 = vunpack.c.l.b16 %v2654
    %v2787 = vunpack.c.l.b16 %v2655
    %v2788 = vunpack.c.l.b16 %v2656
    %v2789 = vunpack.c.l.b16 %v2657
    %v2790 = vunpack.c.l.b16 %v2658
    %v2791 = vunpack.c.l.b16 %v2659
    %v2792 = vunpack.c.l.b16 %v2660
    %v2793 = vunpack.c.l.b16 %v2661
    %v2794 = vunpack.c.l.b16 %v2662
    %v2795 = vunpack.c.l.b16 %v2663
    %v2796 = vunpack.c.l.b16 %v2664
    %v2797 = vunpack.c.l.b16 %v2665
    %v2798 = vunpack.c.l.b16 %v2666
    %v2799 = vunpack.c.l.b16 %v2667
    %v2800 = vunpack.c.l.b16 %v2668
    %v2801 = vunpack.c.l.b16 %v2669
    %v2802 = vunpack.c.l.b16 %v2670
    %v2803 = vunpack.c.l.b16 %v2671
    %v2804 = vunpack.c.l.b16 %v2672
    %v2805 = vunpack.c.l.b16 %v2673
    %v2806 = vunpack.c.l.b16 %v2674
    %v2807 = vpack.c.b16 %v2744, %v2743
    %v2808 = vpack.c.b16 %v2746, %v2745
    %v2809 = vpack.c.b16 %v2748, %v2747
    %v2810 = vpack.c.b16 %v2750, %v2749
    %v2811 = vpack.c.b16 %v2752, %v2751
    %v2812 = vpack.c.b16 %v2754, %v2753
    %v2813 = vpack.c.b16 %v2756, %v2755
    %v2814 = vpack.c.b16 %v2758, %v2757
    %v2815 = vpack.c.b16 %v2760, %v2759
    %v2816 = vpack.c.b16 %v2762, %v2761
    %v2817 = vpack.c.b16 %v2764, %v2763
    %v2818 = vpack.c.b16 %v2766, %v2765
    %v2819 = vpack.c.b16 %v2768, %v2767
    %v2820 = vpack.c.b16 %v2770, %v2769
    %v2821 = vpack.c.b16 %v2772, %v2771
    %v2822 = vpack.c.b16 %v2774, %v2773
    %v2823 = vpack.c.b16 %v2776, %v2775
    %v2824 = vpack.c.b16 %v2778, %v2777
    %v2825 = vpack.c.b16 %v2780, %v2779
    %v2826 = vpack.c.b16 %v2782, %v2781
    %v2827 = vpack.c.b16 %v2784, %v2783
    %v2828 = vpack.c.b16 %v2786, %v2785
    %v2829 = vpack.c.b16 %v2788, %v2787
    %v2830 = vpack.c.b16 %v2790, %v2789
    %v2831 = vpack.c.b16 %v2792, %v2791
    %v2832 = vpack.c.b16 %v2794, %v2793
    %v2833 = vpack.c.b16 %v2796, %v2795
    %v2834 = vpack.c.b16 %v2798, %v2797
    %v2835 = vpack.c.b16 %v2800, %v2799
    %v2836 = vpack.c.b16 %v2802, %v2801
    %v2837 = vpack.c.b16 %v2804, %v2803
    %v2838 = vpack.c.b16 %v2806, %v2805
    %2871 = vmatpush.bf16.msra.mxu0 %v2814
    %2872 = vmatpush.bf16.msra.mxu0 %v2813
    %2873 = vmatpush.bf16.msra.mxu0 %v2812
    %2874 = vmatpush.bf16.msra.mxu0 %v2811
    %2875 = vmatpush.bf16.msra.mxu0 %v2810
    %2876 = vmatpush.bf16.msra.mxu0 %v2809
    %2877 = vmatpush.bf16.msra.mxu0 %v2808
    %2878 = vmatpush.bf16.msra.mxu0 %v2807
    %2879 = vmatmul.bf16.gmra.mxu0 %v2607
    %v2880 = vpop.f32.mrf.mxu0
    %v2881 = vadd.f32 %v2677, %v2880
    %v2882 = vpop.f32.mrf.mxu0
    %v2883 = vadd.f32 %v2677, %v2882
    %2884 = vdwg.mxu0
    %2885 = vmatpush.bf16.msra.mxu0 %v2822
    %2886 = vmatpush.bf16.msra.mxu0 %v2821
    %2887 = vmatpush.bf16.msra.mxu0 %v2820
    %2888 = vmatpush.bf16.msra.mxu0 %v2819
    %2889 = vmatpush.bf16.msra.mxu0 %v2818
    %2890 = vmatpush.bf16.msra.mxu0 %v2817
    %2891 = vmatpush.bf16.msra.mxu0 %v2816
    %2892 = vmatpush.bf16.msra.mxu0 %v2815
    %2893 = vmatmul.bf16.gmra.mxu0 %v2608
    %v2894 = vpop.f32.mrf.mxu0
    %v2895 = vadd.f32 %v2881, %v2894
    %v2896 = vpop.f32.mrf.mxu0
    %v2897 = vadd.f32 %v2883, %v2896
    %2898 = vdwg.mxu0
    %2899 = vmatpush.bf16.msra.mxu0 %v2830
    %2900 = vmatpush.bf16.msra.mxu0 %v2829
    %2901 = vmatpush.bf16.msra.mxu0 %v2828
    %2902 = vmatpush.bf16.msra.mxu0 %v2827
    %2903 = vmatpush.bf16.msra.mxu0 %v2826
    %2904 = vmatpush.bf16.msra.mxu0 %v2825
    %2905 = vmatpush.bf16.msra.mxu0 %v2824
    %2906 = vmatpush.bf16.msra.mxu0 %v2823
    %2907 = vmatmul.bf16.gmra.mxu0 %v2609
    %v2908 = vpop.f32.mrf.mxu0
    %v2909 = vadd.f32 %v2895, %v2908
    %v2910 = vpop.f32.mrf.mxu0
    %v2911 = vadd.f32 %v2897, %v2910
    %2912 = vdwg.mxu0
    %2913 = vmatpush.bf16.msra.mxu0 %v2838
    %2914 = vmatpush.bf16.msra.mxu0 %v2837
    %2915 = vmatpush.bf16.msra.mxu0 %v2836
    %2916 = vmatpush.bf16.msra.mxu0 %v2835
    %2917 = vmatpush.bf16.msra.mxu0 %v2834
    %2918 = vmatpush.bf16.msra.mxu0 %v2833
    %2919 = vmatpush.bf16.msra.mxu0 %v2832
    %2920 = vmatpush.bf16.msra.mxu0 %v2831
    %2921 = vmatmul.bf16.gmra.mxu0 %v2610
    %v2922 = vpop.f32.mrf.mxu0
    %v2923 = vadd.f32 %v2909, %v2922
    %v2924 = vpop.f32.mrf.mxu0
    %v2925 = vadd.f32 %v2911, %v2924
    %2926 = vdwg.mxu0
    %2927 = vst [vmem:[%s10] sm:$0xff] %v2923
    %2928 = vst [vmem:[%s10 + $0x8] sm:$0xff] %v2925
    // Predicated region
    $region58: #{gcn_flow_forward.1} parent=1 // pred_check
      _
    $region59: #{gcn_flow_forward.1} parent=1 // pred_check_branch
      %2930 = sbr.rel (0) target = $region61
    $region60: #{gcn_flow_forward.1} parent=1 // pred_region
      _
    $region61: #{gcn_flow_forward.1} parent=1 // pred_fallthru
      _
    // Predicated region
    $region62: #{gcn_flow_forward.1} parent=1 // pred_check
      _
    $region63: #{gcn_flow_forward.1} parent=1 // pred_check_branch
      %2932 = sbr.rel (0) target = $region65
    $region64: #{gcn_flow_forward.1} parent=1 // pred_region
      _
    $region65: #{gcn_flow_forward.1} parent=1 // pred_fallthru
      _
    %2933 = vsyncpa [#allocation3], 1
    %2934 = vsyncpa [#allocation5], 1
    %2935 = vsyncpa [#allocation8], 1

</llo_original>
